<compile_context>
chip_gen: v7x
topology: tpu7x:2x2x1
jax: 0.10.0
libtpu: 0.0.40
codegen_flags: <defaults>
</compile_context>

<pallas_src>
import functools

import jax
import jax.numpy as jnp
from jax.experimental import pallas as pl
from jax.experimental.pallas import tpu as pltpu


# ----------------------------------------------------------------------------
# Fused Pallas kernel: conv1 -> bn1 -> relu -> conv2 -> bn2 -> +id -> relu
# ----------------------------------------------------------------------------
def _rs_block_kernel(x_ref, w1_ref, w2_ref, g1_ref, b1_ref, g2_ref, b2_ref,
                     r_ref, o_ref, pad_ref, im_ref, *, B, H, W, C, eps):
    WC = W * C
    WpC = (W + 2) * C
    Hp = H + 2
    inv_count = 1.0 / float(B * H * W)

    # Zero the padded-image scratch once per forward.  Only the interior rows and
    # the leading W*C lane groups are ever rewritten below, so the zero top/bottom
    # rows of every image block and the two trailing zero lane groups (onto which
    # the banded weights route out-of-range horizontal taps) persist across both
    # convolutions.
    pad_ref[...] = jnp.zeros(pad_ref.shape, pad_ref.dtype)

    def conv3x3(act, w_ref_loc):
        # act: (B*H, W*C) lane-dense activation slab (f32).
        # 1) write each image's interior rows into its padded block,
        for b in range(B):
            pad_ref[b * Hp + 1:b * Hp + 1 + H, 0:WC] = act[b * H:(b + 1) * H, :]
        # 2) build the (B*H, 3*(W+2)*C) im2row slab with three shifted row copies,
        for dy in range(3):
            for b in range(B):
                im_ref[b * H:(b + 1) * H, dy * WpC:(dy + 1) * WpC] = (
                    pad_ref[b * Hp + dy:b * Hp + dy + H, :])
        # 3) one MXU matmul per conv: (B*H, 3*(W+2)*C) x (3*(W+2)*C, W*C),
        #    K = 432 instead of three K = 144 matmuls, result lane-dense.
        return jnp.dot(im_ref[...], w_ref_loc[...],
                       preferred_element_type=jnp.float32)

    def bn_scale_bias(y, gamma_t, beta_t):
        # Training-mode BatchNorm finalized fully in-kernel.  The per-channel
        # reduction over the W lane groups (and broadcast back to W*C lanes) is a
        # single small matmul against the tiled-identity matrix r_ref, keeping
        # everything lane-dense (no cross-lane XLU reshapes, no host glue).
        s = jnp.dot(jnp.sum(y, axis=0, keepdims=True), r_ref[...],
                    preferred_element_type=jnp.float32)          # (1, WC) chan sums
        q = jnp.dot(jnp.sum(y * y, axis=0, keepdims=True), r_ref[...],
                    preferred_element_type=jnp.float32)          # (1, WC) chan sq-sums
        mean = s * inv_count
        # Biased variance via E[x^2] - E[x]^2 (fine at these scales; use a
        # Welford-style update for production BN).
        var = jnp.maximum(q * inv_count - mean * mean, 0.0)
        scale = gamma_t * jax.lax.rsqrt(var + eps)
        bias = beta_t - mean * scale
        return scale, bias

    x = x_ref[...]                                               # (B*H, W*C) identity

    # conv1 -> bn1 -> relu
    y1 = conv3x3(x, w1_ref)
    s1, t1 = bn_scale_bias(y1, g1_ref[...], b1_ref[...])
    z1 = jnp.maximum(y1 * s1 + t1, 0.0)

    # conv2 -> bn2 -> + identity -> relu
    y2 = conv3x3(z1, w2_ref)
    s2, t2 = bn_scale_bias(y2, g2_ref[...], b2_ref[...])
    o_ref[...] = jnp.maximum(y2 * s2 + t2 + x, 0.0)


# ----------------------------------------------------------------------------
# pallas_call wrapper
# ----------------------------------------------------------------------------
def _rs_block_pallas(x2d, prep, B, H, W, C, eps):
    WC = W * C
    K = 3 * (W + 2) * C
    kernel = functools.partial(_rs_block_kernel, B=B, H=H, W=W, C=C, eps=eps)
    return pl.pallas_call(
        kernel,
        out_shape=jax.ShapeDtypeStruct((B * H, WC), jnp.float32),
        grid_spec=pltpu.PrefetchScalarGridSpec(
            num_scalar_prefetch=0,
            # TODO(synk): for v7x (2 TensorCores) split into 2 parallel slices
            # with per-core BN partials + a cross-core reduce.
            grid=(1,),
            in_specs=[
                pl.BlockSpec((B * H, WC), lambda i: (0, 0)),   # x (identity path)
                pl.BlockSpec((K, WC), lambda i: (0, 0)),       # fused banded conv1 w
                pl.BlockSpec((K, WC), lambda i: (0, 0)),       # fused banded conv2 w
                pl.BlockSpec((1, WC), lambda i: (0, 0)),       # gamma1 tiled over W
                pl.BlockSpec((1, WC), lambda i: (0, 0)),       # beta1  tiled over W
                pl.BlockSpec((1, WC), lambda i: (0, 0)),       # gamma2 tiled over W
                pl.BlockSpec((1, WC), lambda i: (0, 0)),       # beta2  tiled over W
                pl.BlockSpec((WC, WC), lambda i: (0, 0)),      # channel-reduce matrix
            ],
            out_specs=pl.BlockSpec((B * H, WC), lambda i: (0, 0)),
            scratch_shapes=[
                pltpu.VMEM((B * (H + 2), (W + 2) * C), jnp.float32),  # padded images
                pltpu.VMEM((B * H, 3 * (W + 2) * C), jnp.float32),    # im2row slab
            ],
        ),
        compiler_params=pltpu.CompilerParams(
            dimension_semantics=("arbitrary",)),
    )(x2d, prep["w1b"], prep["w2b"], prep["g1"], prep["b1"],
      prep["g2"], prep["b2"], prep["rmat"])


# ----------------------------------------------------------------------------
# One-time (outside jit) parameter preparation
# ----------------------------------------------------------------------------
def _build_banded_weight(w_hwio, W):
    """Fold a 3x3 conv into one fused banded matrix (3*(W+2)*Cin, W*Cout).

    Row index = dy*(W+2)*Cin + jx*Cin + cin matches the im2row slab layout
    (three vertically shifted zero-padded rows concatenated along lanes);
    column index = w*Cout + cout is lane-dense output.  Out-of-range horizontal
    taps are routed (mod W+2) onto the two trailing zero lane groups.
    Built with a single one-hot einsum (no per-tap scatters).
    """
    KH, KW, Cin, Cout = w_hwio.shape
    Wp = W + 2
    jx = (jnp.arange(W)[:, None] + jnp.arange(KW)[None, :] - 1) % Wp      # (W, KW)
    sel = (jx[:, :, None] == jnp.arange(Wp)[None, None, :]).astype(w_hwio.dtype)
    band = jnp.einsum("wxj,yxio->yjiwo", sel, w_hwio)   # (KH, Wp, Cin, W, Cout)
    return band.reshape(KH * Wp * Cin, W * Cout)


def rs_block_prepare(params, W):
    """Build banded weights, tiled BN params and the channel-reduce matrix once."""
    C = params["gamma1"].shape[0]

    def tile(v):  # (C,) -> (1, W*C) lane-dense row matching lane = w*C + c
        return jnp.tile(v.astype(jnp.float32), W)[None, :]

    w1b = _build_banded_weight(
        jnp.transpose(params["w1"], (2, 3, 1, 0)).astype(jnp.float32), W)
    w2b = _build_banded_weight(
        jnp.transpose(params["w2"], (2, 3, 1, 0)).astype(jnp.float32), W)
    rmat = jnp.tile(jnp.eye(C, dtype=jnp.float32), (W, W))   # (W*C, W*C)
    return {"w1b": w1b, "w2b": w2b, "rmat": rmat,
            "g1": tile(params["gamma1"]), "b1": tile(params["beta1"]),
            "g2": tile(params["gamma2"]), "b2": tile(params["beta2"])}


# ----------------------------------------------------------------------------
# RsBlock forward (training-mode BatchNorm, stride=1, no downsample)
# ----------------------------------------------------------------------------
def rs_block_forward(x_nchw, prep, eps=1e-5):
    B, C, H, W = x_nchw.shape
    # NCHW -> NHWC -> lane-dense (B*H, W*C); the reshape is layout-free.
    x2d = jnp.transpose(x_nchw, (0, 2, 3, 1)).astype(jnp.float32).reshape(B * H, W * C)
    out2d = _rs_block_pallas(x2d, prep, B, H, W, C, eps)
    return jnp.transpose(out2d.reshape(B, H, W, C), (0, 3, 1, 2))   # back to NCHW


# ----------------------------------------------------------------------------
# Pure-JAX reference (sanity check against the Pallas path)
# ----------------------------------------------------------------------------
def _ref_conv(x_nchw, w_oihw):
    return jax.lax.conv_general_dilated(
        x_nchw, w_oihw, window_strides=(1, 1), padding="SAME",
        dimension_numbers=("NCHW", "OIHW", "NCHW"),
        precision=jax.lax.Precision.HIGHEST)


def _ref_bn_train(y_nchw, gamma, beta, eps=1e-5):
    mean = y_nchw.mean(axis=(0, 2, 3), keepdims=True)
    var = y_nchw.var(axis=(0, 2, 3), keepdims=True)
    g = gamma[None, :, None, None]
    b = beta[None, :, None, None]
    return g * (y_nchw - mean) / jnp.sqrt(var + eps) + b


def rs_block_reference(x_nchw, params):
    y1 = _ref_conv(x_nchw, params["w1"])
    z1 = jax.nn.relu(_ref_bn_train(y1, params["gamma1"], params["beta1"]))
    y2 = _ref_conv(z1, params["w2"])
    out = _ref_bn_train(y2, params["gamma2"], params["beta2"]) + x_nchw
    return jax.nn.relu(out)


# ----------------------------------------------------------------------------
if __name__ == "__main__":
    B, C, H, W = 2, 8, 16, 16   # in_channels == out_channels, stride=1, no downsample
                                # (W*C = 128 -> lane-dense activations)

    key = jax.random.PRNGKey(0)
    kx, kw1, kw2 = jax.random.split(key, 3)

    x = jax.random.normal(kx, (B, C, H, W), dtype=jnp.float32)

    params = {
        # conv weights (OIHW), bias=False as in the module
        "w1": 0.1 * jax.random.normal(kw1, (C, C, 3, 3), dtype=jnp.float32),
        "w2": 0.1 * jax.random.normal(kw2, (C, C, 3, 3), dtype=jnp.float32),
        # BatchNorm affine params at PyTorch default init
        "gamma1": jnp.ones((C,), jnp.float32),
        "beta1": jnp.zeros((C,), jnp.float32),
        "gamma2": jnp.ones((C,), jnp.float32),
        "beta2": jnp.zeros((C,), jnp.float32),
    }

    # Weight / BN-param preparation happens ONCE, outside the jitted forward.
    prep = jax.tree_util.tree_map(jax.block_until_ready, rs_block_prepare(params, W))

    fwd = jax.jit(rs_block_forward)
    out = jax.block_until_ready(fwd(x, prep))
    ref = jax.block_until_ready(rs_block_reference(x, params))

    assert out.shape == (B, C, H, W)
    max_diff = jnp.max(jnp.abs(out - ref))
    assert jnp.allclose(out, ref, rtol=1e-3, atol=1e-3), f"max abs diff {max_diff}"

    print("KERNEL_OK")
</pallas_src>

<mosaic_0001>
module attributes {stable_mosaic.version = 11 : i64} {
  func.func @_rs_block_kernel(%arg0: i32, %arg1: memref<32x128xf32, #tpu.memory_space<vmem>>, %arg2: memref<432x128xf32, #tpu.memory_space<vmem>>, %arg3: memref<432x128xf32, #tpu.memory_space<vmem>>, %arg4: memref<1x128xf32, #tpu.memory_space<vmem>>, %arg5: memref<1x128xf32, #tpu.memory_space<vmem>>, %arg6: memref<1x128xf32, #tpu.memory_space<vmem>>, %arg7: memref<1x128xf32, #tpu.memory_space<vmem>>, %arg8: memref<128x128xf32, #tpu.memory_space<vmem>>, %arg9: memref<32x128xf32, #tpu.memory_space<vmem>>, %arg10: memref<36x144xf32, #tpu.memory_space<vmem>>, %arg11: memref<32x432xf32, #tpu.memory_space<vmem>>) attributes {dimension_semantics = [#tpu.dimension_semantics<arbitrary>], iteration_bounds = array<i64: 1>, scalar_prefetch = 0 : i64, scratch_operands = 2 : i64, tpu.core_type = #tpu.core_type<tc>, window_params = [{pipeline_mode = #tpu.pipeline_mode<synchronous>, transform_indices = @transform_0, window_bounds = array<i64: 32, 128>}, {pipeline_mode = #tpu.pipeline_mode<synchronous>, transform_indices = @transform_1, window_bounds = array<i64: 432, 128>}, {pipeline_mode = #tpu.pipeline_mode<synchronous>, transform_indices = @transform_2, window_bounds = array<i64: 432, 128>}, {pipeline_mode = #tpu.pipeline_mode<synchronous>, transform_indices = @transform_3, window_bounds = array<i64: 1, 128>}, {pipeline_mode = #tpu.pipeline_mode<synchronous>, transform_indices = @transform_4, window_bounds = array<i64: 1, 128>}, {pipeline_mode = #tpu.pipeline_mode<synchronous>, transform_indices = @transform_5, window_bounds = array<i64: 1, 128>}, {pipeline_mode = #tpu.pipeline_mode<synchronous>, transform_indices = @transform_6, window_bounds = array<i64: 1, 128>}, {pipeline_mode = #tpu.pipeline_mode<synchronous>, transform_indices = @transform_7, window_bounds = array<i64: 128, 128>}, {pipeline_mode = #tpu.pipeline_mode<synchronous>, transform_indices = @transform_8, window_bounds = array<i64: 32, 128>}]} {
    %cst = arith.constant 0.000000e+00 : f32
    %0 = vector.broadcast %cst : f32 to vector<36x144xf32>
    %c0 = arith.constant 0 : index
    %c0_0 = arith.constant 0 : index
    %1 = vector.load %arg10[%c0, %c0_0] : memref<36x144xf32, #tpu.memory_space<vmem>>, vector<36x144xf32>
    tpu.vector_store %arg10[%c0, %c0_0], %0 {strides = array<i32>} : memref<36x144xf32, #tpu.memory_space<vmem>>, vector<36x144xf32>,
    %c0_1 = arith.constant 0 : index
    %c0_2 = arith.constant 0 : index
    %2 = vector.load %arg1[%c0_1, %c0_2] : memref<32x128xf32, #tpu.memory_space<vmem>>, vector<32x128xf32>
    %3 = vector.extract_strided_slice %2 {offsets = [0, 0], sizes = [16, 128], strides = [1, 1]} : vector<32x128xf32> to vector<16x128xf32>
    %c1 = arith.constant 1 : index
    %c0_3 = arith.constant 0 : index
    %4 = vector.load %arg10[%c1, %c0_3] : memref<36x144xf32, #tpu.memory_space<vmem>>, vector<16x128xf32>
    tpu.vector_store %arg10[%c1, %c0_3], %3 {strides = array<i32>} : memref<36x144xf32, #tpu.memory_space<vmem>>, vector<16x128xf32>,
    %5 = vector.extract_strided_slice %2 {offsets = [16, 0], sizes = [16, 128], strides = [1, 1]} : vector<32x128xf32> to vector<16x128xf32>
    %c19 = arith.constant 19 : index
    %c0_4 = arith.constant 0 : index
    %6 = vector.load %arg10[%c19, %c0_4] : memref<36x144xf32, #tpu.memory_space<vmem>>, vector<16x128xf32>
    tpu.vector_store %arg10[%c19, %c0_4], %5 {strides = array<i32>} : memref<36x144xf32, #tpu.memory_space<vmem>>, vector<16x128xf32>,
    %c0_5 = arith.constant 0 : index
    %c0_6 = arith.constant 0 : index
    %7 = vector.load %arg10[%c0_5, %c0_6] : memref<36x144xf32, #tpu.memory_space<vmem>>, vector<16x144xf32>
    %c0_7 = arith.constant 0 : index
    %c0_8 = arith.constant 0 : index
    %8 = vector.load %arg11[%c0_7, %c0_8] : memref<32x432xf32, #tpu.memory_space<vmem>>, vector<16x144xf32>
    tpu.vector_store %arg11[%c0_7, %c0_8], %7 {strides = array<i32>} : memref<32x432xf32, #tpu.memory_space<vmem>>, vector<16x144xf32>,
    %c18 = arith.constant 18 : index
    %c0_9 = arith.constant 0 : index
    %9 = vector.load %arg10[%c18, %c0_9] : memref<36x144xf32, #tpu.memory_space<vmem>>, vector<16x144xf32>
    %c16 = arith.constant 16 : index
    %c0_10 = arith.constant 0 : index
    %10 = vector.load %arg11[%c16, %c0_10] : memref<32x432xf32, #tpu.memory_space<vmem>>, vector<16x144xf32>
    tpu.vector_store %arg11[%c16, %c0_10], %9 {strides = array<i32>} : memref<32x432xf32, #tpu.memory_space<vmem>>, vector<16x144xf32>,
    %c1_11 = arith.constant 1 : index
    %c0_12 = arith.constant 0 : index
    %11 = vector.load %arg10[%c1_11, %c0_12] : memref<36x144xf32, #tpu.memory_space<vmem>>, vector<16x144xf32>
    %c0_13 = arith.constant 0 : index
    %c144 = arith.constant 144 : index
    %12 = vector.load %arg11[%c0_13, %c144] : memref<32x432xf32, #tpu.memory_space<vmem>>, vector<16x144xf32>
    tpu.vector_store %arg11[%c0_13, %c144], %11 {strides = array<i32>} : memref<32x432xf32, #tpu.memory_space<vmem>>, vector<16x144xf32>,
    %c19_14 = arith.constant 19 : index
    %c0_15 = arith.constant 0 : index
    %13 = vector.load %arg10[%c19_14, %c0_15] : memref<36x144xf32, #tpu.memory_space<vmem>>, vector<16x144xf32>
    %c16_16 = arith.constant 16 : index
    %c144_17 = arith.constant 144 : index
    %14 = vector.load %arg11[%c16_16, %c144_17] : memref<32x432xf32, #tpu.memory_space<vmem>>, vector<16x144xf32>
    tpu.vector_store %arg11[%c16_16, %c144_17], %13 {strides = array<i32>} : memref<32x432xf32, #tpu.memory_space<vmem>>, vector<16x144xf32>,
    %c2 = arith.constant 2 : index
    %c0_18 = arith.constant 0 : index
    %15 = vector.load %arg10[%c2, %c0_18] : memref<36x144xf32, #tpu.memory_space<vmem>>, vector<16x144xf32>
    %c0_19 = arith.constant 0 : index
    %c288 = arith.constant 288 : index
    %16 = vector.load %arg11[%c0_19, %c288] : memref<32x432xf32, #tpu.memory_space<vmem>>, vector<16x144xf32>
    tpu.vector_store %arg11[%c0_19, %c288], %15 {strides = array<i32>} : memref<32x432xf32, #tpu.memory_space<vmem>>, vector<16x144xf32>,
    %c20 = arith.constant 20 : index
    %c0_20 = arith.constant 0 : index
    %17 = vector.load %arg10[%c20, %c0_20] : memref<36x144xf32, #tpu.memory_space<vmem>>, vector<16x144xf32>
    %c16_21 = arith.constant 16 : index
    %c288_22 = arith.constant 288 : index
    %18 = vector.load %arg11[%c16_21, %c288_22] : memref<32x432xf32, #tpu.memory_space<vmem>>, vector<16x144xf32>
    tpu.vector_store %arg11[%c16_21, %c288_22], %17 {strides = array<i32>} : memref<32x432xf32, #tpu.memory_space<vmem>>, vector<16x144xf32>,
    %c0_23 = arith.constant 0 : index
    %c0_24 = arith.constant 0 : index
    %19 = vector.load %arg11[%c0_23, %c0_24] : memref<32x432xf32, #tpu.memory_space<vmem>>, vector<32x432xf32>
    %c0_25 = arith.constant 0 : index
    %c0_26 = arith.constant 0 : index
    %20 = vector.load %arg2[%c0_25, %c0_26] : memref<432x128xf32, #tpu.memory_space<vmem>>, vector<432x128xf32>
    %cst_27 = arith.constant dense<0.000000e+00> : vector<32x128xf32>
    %21 = tpu.matmul %19, %20, %cst_27 {dimension_numbers = #tpu.dot_dimension_numbers<[1], [0], [0], [1], [0, 0, 1, 1], [], []>} : vector<32x432xf32>, vector<432x128xf32>, vector<32x128xf32> -> vector<32x128xf32>
    %c0_28 = arith.constant 0 : index
    %c0_29 = arith.constant 0 : index
    %22 = vector.load %arg4[%c0_28, %c0_29] : memref<1x128xf32, #tpu.memory_space<vmem>>, vector<1x128xf32>
    %c0_30 = arith.constant 0 : index
    %c0_31 = arith.constant 0 : index
    %23 = vector.load %arg5[%c0_30, %c0_31] : memref<1x128xf32, #tpu.memory_space<vmem>>, vector<1x128xf32>
    %cst_32 = arith.constant dense<0.000000e+00> : vector<128xf32>
    %24 = vector.multi_reduction <add>, %21, %cst_32 [0] : vector<32x128xf32> to vector<128xf32>
    %25 = vector.shape_cast %24 : vector<128xf32> to vector<1x128xf32>
    %c0_33 = arith.constant 0 : index
    %c0_34 = arith.constant 0 : index
    %26 = vector.load %arg8[%c0_33, %c0_34] : memref<128x128xf32, #tpu.memory_space<vmem>>, vector<128x128xf32>
    %cst_35 = arith.constant dense<0.000000e+00> : vector<1x128xf32>
    %27 = tpu.matmul %25, %26, %cst_35 {dimension_numbers = #tpu.dot_dimension_numbers<[1], [0], [0], [1], [0, 0, 1, 1], [], []>} : vector<1x128xf32>, vector<128x128xf32>, vector<1x128xf32> -> vector<1x128xf32>
    %28 = arith.mulf %21, %21 : vector<32x128xf32>
    %cst_36 = arith.constant dense<0.000000e+00> : vector<128xf32>
    %29 = vector.multi_reduction <add>, %28, %cst_36 [0] : vector<32x128xf32> to vector<128xf32>
    %30 = vector.shape_cast %29 : vector<128xf32> to vector<1x128xf32>
    %c0_37 = arith.constant 0 : index
    %c0_38 = arith.constant 0 : index
    %31 = vector.load %arg8[%c0_37, %c0_38] : memref<128x128xf32, #tpu.memory_space<vmem>>, vector<128x128xf32>
    %cst_39 = arith.constant dense<0.000000e+00> : vector<1x128xf32>
    %32 = tpu.matmul %30, %31, %cst_39 {dimension_numbers = #tpu.dot_dimension_numbers<[1], [0], [0], [1], [0, 0, 1, 1], [], []>} : vector<1x128xf32>, vector<128x128xf32>, vector<1x128xf32> -> vector<1x128xf32>
    %cst_40 = arith.constant 0.001953125 : f32
    %33 = vector.broadcast %cst_40 : f32 to vector<1x128xf32>
    %34 = arith.mulf %27, %33 : vector<1x128xf32>
    %cst_41 = arith.constant 0.001953125 : f32
    %35 = vector.broadcast %cst_41 : f32 to vector<1x128xf32>
    %36 = arith.mulf %32, %35 : vector<1x128xf32>
    %37 = arith.mulf %34, %34 : vector<1x128xf32>
    %38 = arith.subf %36, %37 : vector<1x128xf32>
    %cst_42 = arith.constant 0.000000e+00 : f32
    %39 = vector.broadcast %cst_42 : f32 to vector<1x128xf32>
    %40 = arith.maximumf %38, %39 : vector<1x128xf32>
    %cst_43 = arith.constant 9.99999974E-6 : f32
    %41 = vector.broadcast %cst_43 : f32 to vector<1x128xf32>
    %42 = arith.addf %40, %41 : vector<1x128xf32>
    %43 = math.rsqrt %42 : vector<1x128xf32>
    %44 = arith.mulf %22, %43 : vector<1x128xf32>
    %45 = arith.mulf %34, %44 : vector<1x128xf32>
    %46 = arith.subf %23, %45 : vector<1x128xf32>
    %47 = vector.broadcast %44 : vector<1x128xf32> to vector<32x128xf32>
    %48 = arith.mulf %21, %47 : vector<32x128xf32>
    %49 = vector.broadcast %46 : vector<1x128xf32> to vector<32x128xf32>
    %50 = arith.addf %48, %49 : vector<32x128xf32>
    %cst_44 = arith.constant 0.000000e+00 : f32
    %51 = vector.broadcast %cst_44 : f32 to vector<32x128xf32>
    %52 = arith.maximumf %50, %51 : vector<32x128xf32>
    %53 = vector.extract_strided_slice %52 {offsets = [0, 0], sizes = [16, 128], strides = [1, 1]} : vector<32x128xf32> to vector<16x128xf32>
    %c1_45 = arith.constant 1 : index
    %c0_46 = arith.constant 0 : index
    %54 = vector.load %arg10[%c1_45, %c0_46] : memref<36x144xf32, #tpu.memory_space<vmem>>, vector<16x128xf32>
    tpu.vector_store %arg10[%c1_45, %c0_46], %53 {strides = array<i32>} : memref<36x144xf32, #tpu.memory_space<vmem>>, vector<16x128xf32>,
    %55 = vector.extract_strided_slice %52 {offsets = [16, 0], sizes = [16, 128], strides = [1, 1]} : vector<32x128xf32> to vector<16x128xf32>
    %c19_47 = arith.constant 19 : index
    %c0_48 = arith.constant 0 : index
    %56 = vector.load %arg10[%c19_47, %c0_48] : memref<36x144xf32, #tpu.memory_space<vmem>>, vector<16x128xf32>
    tpu.vector_store %arg10[%c19_47, %c0_48], %55 {strides = array<i32>} : memref<36x144xf32, #tpu.memory_space<vmem>>, vector<16x128xf32>,
    %c0_49 = arith.constant 0 : index
    %c0_50 = arith.constant 0 : index
    %57 = vector.load %arg10[%c0_49, %c0_50] : memref<36x144xf32, #tpu.memory_space<vmem>>, vector<16x144xf32>
    %c0_51 = arith.constant 0 : index
    %c0_52 = arith.constant 0 : index
    %58 = vector.load %arg11[%c0_51, %c0_52] : memref<32x432xf32, #tpu.memory_space<vmem>>, vector<16x144xf32>
    tpu.vector_store %arg11[%c0_51, %c0_52], %57 {strides = array<i32>} : memref<32x432xf32, #tpu.memory_space<vmem>>, vector<16x144xf32>,
    %c18_53 = arith.constant 18 : index
    %c0_54 = arith.constant 0 : index
    %59 = vector.load %arg10[%c18_53, %c0_54] : memref<36x144xf32, #tpu.memory_space<vmem>>, vector<16x144xf32>
    %c16_55 = arith.constant 16 : index
    %c0_56 = arith.constant 0 : index
    %60 = vector.load %arg11[%c16_55, %c0_56] : memref<32x432xf32, #tpu.memory_space<vmem>>, vector<16x144xf32>
    tpu.vector_store %arg11[%c16_55, %c0_56], %59 {strides = array<i32>} : memref<32x432xf32, #tpu.memory_space<vmem>>, vector<16x144xf32>,
    %c1_57 = arith.constant 1 : index
    %c0_58 = arith.constant 0 : index
    %61 = vector.load %arg10[%c1_57, %c0_58] : memref<36x144xf32, #tpu.memory_space<vmem>>, vector<16x144xf32>
    %c0_59 = arith.constant 0 : index
    %c144_60 = arith.constant 144 : index
    %62 = vector.load %arg11[%c0_59, %c144_60] : memref<32x432xf32, #tpu.memory_space<vmem>>, vector<16x144xf32>
    tpu.vector_store %arg11[%c0_59, %c144_60], %61 {strides = array<i32>} : memref<32x432xf32, #tpu.memory_space<vmem>>, vector<16x144xf32>,
    %c19_61 = arith.constant 19 : index
    %c0_62 = arith.constant 0 : index
    %63 = vector.load %arg10[%c19_61, %c0_62] : memref<36x144xf32, #tpu.memory_space<vmem>>, vector<16x144xf32>
    %c16_63 = arith.constant 16 : index
    %c144_64 = arith.constant 144 : index
    %64 = vector.load %arg11[%c16_63, %c144_64] : memref<32x432xf32, #tpu.memory_space<vmem>>, vector<16x144xf32>
    tpu.vector_store %arg11[%c16_63, %c144_64], %63 {strides = array<i32>} : memref<32x432xf32, #tpu.memory_space<vmem>>, vector<16x144xf32>,
    %c2_65 = arith.constant 2 : index
    %c0_66 = arith.constant 0 : index
    %65 = vector.load %arg10[%c2_65, %c0_66] : memref<36x144xf32, #tpu.memory_space<vmem>>, vector<16x144xf32>
    %c0_67 = arith.constant 0 : index
    %c288_68 = arith.constant 288 : index
    %66 = vector.load %arg11[%c0_67, %c288_68] : memref<32x432xf32, #tpu.memory_space<vmem>>, vector<16x144xf32>
    tpu.vector_store %arg11[%c0_67, %c288_68], %65 {strides = array<i32>} : memref<32x432xf32, #tpu.memory_space<vmem>>, vector<16x144xf32>,
    %c20_69 = arith.constant 20 : index
    %c0_70 = arith.constant 0 : index
    %67 = vector.load %arg10[%c20_69, %c0_70] : memref<36x144xf32, #tpu.memory_space<vmem>>, vector<16x144xf32>
    %c16_71 = arith.constant 16 : index
    %c288_72 = arith.constant 288 : index
    %68 = vector.load %arg11[%c16_71, %c288_72] : memref<32x432xf32, #tpu.memory_space<vmem>>, vector<16x144xf32>
    tpu.vector_store %arg11[%c16_71, %c288_72], %67 {strides = array<i32>} : memref<32x432xf32, #tpu.memory_space<vmem>>, vector<16x144xf32>,
    %c0_73 = arith.constant 0 : index
    %c0_74 = arith.constant 0 : index
    %69 = vector.load %arg11[%c0_73, %c0_74] : memref<32x432xf32, #tpu.memory_space<vmem>>, vector<32x432xf32>
    %c0_75 = arith.constant 0 : index
    %c0_76 = arith.constant 0 : index
    %70 = vector.load %arg3[%c0_75, %c0_76] : memref<432x128xf32, #tpu.memory_space<vmem>>, vector<432x128xf32>
    %cst_77 = arith.constant dense<0.000000e+00> : vector<32x128xf32>
    %71 = tpu.matmul %69, %70, %cst_77 {dimension_numbers = #tpu.dot_dimension_numbers<[1], [0], [0], [1], [0, 0, 1, 1], [], []>} : vector<32x432xf32>, vector<432x128xf32>, vector<32x128xf32> -> vector<32x128xf32>
    %c0_78 = arith.constant 0 : index
    %c0_79 = arith.constant 0 : index
    %72 = vector.load %arg6[%c0_78, %c0_79] : memref<1x128xf32, #tpu.memory_space<vmem>>, vector<1x128xf32>
    %c0_80 = arith.constant 0 : index
    %c0_81 = arith.constant 0 : index
    %73 = vector.load %arg7[%c0_80, %c0_81] : memref<1x128xf32, #tpu.memory_space<vmem>>, vector<1x128xf32>
    %cst_82 = arith.constant dense<0.000000e+00> : vector<128xf32>
    %74 = vector.multi_reduction <add>, %71, %cst_82 [0] : vector<32x128xf32> to vector<128xf32>
    %75 = vector.shape_cast %74 : vector<128xf32> to vector<1x128xf32>
    %c0_83 = arith.constant 0 : index
    %c0_84 = arith.constant 0 : index
    %76 = vector.load %arg8[%c0_83, %c0_84] : memref<128x128xf32, #tpu.memory_space<vmem>>, vector<128x128xf32>
    %cst_85 = arith.constant dense<0.000000e+00> : vector<1x128xf32>
    %77 = tpu.matmul %75, %76, %cst_85 {dimension_numbers = #tpu.dot_dimension_numbers<[1], [0], [0], [1], [0, 0, 1, 1], [], []>} : vector<1x128xf32>, vector<128x128xf32>, vector<1x128xf32> -> vector<1x128xf32>
    %78 = arith.mulf %71, %71 : vector<32x128xf32>
    %cst_86 = arith.constant dense<0.000000e+00> : vector<128xf32>
    %79 = vector.multi_reduction <add>, %78, %cst_86 [0] : vector<32x128xf32> to vector<128xf32>
    %80 = vector.shape_cast %79 : vector<128xf32> to vector<1x128xf32>
    %c0_87 = arith.constant 0 : index
    %c0_88 = arith.constant 0 : index
    %81 = vector.load %arg8[%c0_87, %c0_88] : memref<128x128xf32, #tpu.memory_space<vmem>>, vector<128x128xf32>
    %cst_89 = arith.constant dense<0.000000e+00> : vector<1x128xf32>
    %82 = tpu.matmul %80, %81, %cst_89 {dimension_numbers = #tpu.dot_dimension_numbers<[1], [0], [0], [1], [0, 0, 1, 1], [], []>} : vector<1x128xf32>, vector<128x128xf32>, vector<1x128xf32> -> vector<1x128xf32>
    %cst_90 = arith.constant 0.001953125 : f32
    %83 = vector.broadcast %cst_90 : f32 to vector<1x128xf32>
    %84 = arith.mulf %77, %83 : vector<1x128xf32>
    %cst_91 = arith.constant 0.001953125 : f32
    %85 = vector.broadcast %cst_91 : f32 to vector<1x128xf32>
    %86 = arith.mulf %82, %85 : vector<1x128xf32>
    %87 = arith.mulf %84, %84 : vector<1x128xf32>
    %88 = arith.subf %86, %87 : vector<1x128xf32>
    %cst_92 = arith.constant 0.000000e+00 : f32
    %89 = vector.broadcast %cst_92 : f32 to vector<1x128xf32>
    %90 = arith.maximumf %88, %89 : vector<1x128xf32>
    %cst_93 = arith.constant 9.99999974E-6 : f32
    %91 = vector.broadcast %cst_93 : f32 to vector<1x128xf32>
    %92 = arith.addf %90, %91 : vector<1x128xf32>
    %93 = math.rsqrt %92 : vector<1x128xf32>
    %94 = arith.mulf %72, %93 : vector<1x128xf32>
    %95 = arith.mulf %84, %94 : vector<1x128xf32>
    %96 = arith.subf %73, %95 : vector<1x128xf32>
    %97 = vector.broadcast %94 : vector<1x128xf32> to vector<32x128xf32>
    %98 = arith.mulf %71, %97 : vector<32x128xf32>
    %99 = vector.broadcast %96 : vector<1x128xf32> to vector<32x128xf32>
    %100 = arith.addf %98, %99 : vector<32x128xf32>
    %101 = arith.addf %100, %2 : vector<32x128xf32>
    %cst_94 = arith.constant 0.000000e+00 : f32
    %102 = vector.broadcast %cst_94 : f32 to vector<32x128xf32>
    %103 = arith.maximumf %101, %102 : vector<32x128xf32>
    %c0_95 = arith.constant 0 : index
    %c0_96 = arith.constant 0 : index
    %104 = vector.load %arg9[%c0_95, %c0_96] : memref<32x128xf32, #tpu.memory_space<vmem>>, vector<32x128xf32>
    tpu.vector_store %arg9[%c0_95, %c0_96], %103 {strides = array<i32>} : memref<32x128xf32, #tpu.memory_space<vmem>>, vector<32x128xf32>,
    return
  }
  func.func @transform_0(%arg0: i32) -> (i32, i32) {
    %c0_i32 = arith.constant 0 : i32
    %c0_i32_0 = arith.constant 0 : i32
    %c0_i32_1 = arith.constant 0 : i32
    return %c0_i32, %c0_i32_0 : i32, i32
  }
  func.func @transform_1(%arg0: i32) -> (i32, i32) {
    %c0_i32 = arith.constant 0 : i32
    %c0_i32_0 = arith.constant 0 : i32
    %c0_i32_1 = arith.constant 0 : i32
    return %c0_i32, %c0_i32_0 : i32, i32
  }
  func.func @transform_2(%arg0: i32) -> (i32, i32) {
    %c0_i32 = arith.constant 0 : i32
    %c0_i32_0 = arith.constant 0 : i32
    %c0_i32_1 = arith.constant 0 : i32
    return %c0_i32, %c0_i32_0 : i32, i32
  }
  func.func @transform_3(%arg0: i32) -> (i32, i32) {
    %c0_i32 = arith.constant 0 : i32
    %c0_i32_0 = arith.constant 0 : i32
    %c0_i32_1 = arith.constant 0 : i32
    return %c0_i32, %c0_i32_0 : i32, i32
  }
  func.func @transform_4(%arg0: i32) -> (i32, i32) {
    %c0_i32 = arith.constant 0 : i32
    %c0_i32_0 = arith.constant 0 : i32
    %c0_i32_1 = arith.constant 0 : i32
    return %c0_i32, %c0_i32_0 : i32, i32
  }
  func.func @transform_5(%arg0: i32) -> (i32, i32) {
    %c0_i32 = arith.constant 0 : i32
    %c0_i32_0 = arith.constant 0 : i32
    %c0_i32_1 = arith.constant 0 : i32
    return %c0_i32, %c0_i32_0 : i32, i32
  }
  func.func @transform_6(%arg0: i32) -> (i32, i32) {
    %c0_i32 = arith.constant 0 : i32
    %c0_i32_0 = arith.constant 0 : i32
    %c0_i32_1 = arith.constant 0 : i32
    return %c0_i32, %c0_i32_0 : i32, i32
  }
  func.func @transform_7(%arg0: i32) -> (i32, i32) {
    %c0_i32 = arith.constant 0 : i32
    %c0_i32_0 = arith.constant 0 : i32
    %c0_i32_1 = arith.constant 0 : i32
    return %c0_i32, %c0_i32_0 : i32, i32
  }
  func.func @transform_8(%arg0: i32) -> (i32, i32) {
    %c0_i32 = arith.constant 0 : i32
    %c0_i32_0 = arith.constant 0 : i32
    %c0_i32_1 = arith.constant 0 : i32
    return %c0_i32, %c0_i32_0 : i32, i32
  }
}

</mosaic_0001>

<llo_original>
// kernel: rs_block_forward.1
$region0: #{rs_block_forward.1}
  #allocation0 [shape = 'u32[]', space=smem, size = 0x4, offset = 0x4, fixed_abs, tag = 'smem constant byte address 0x4 - core index']
  #allocation1 [shape = 'u32[144,128]{1,0:T(1,128)}', space=vmem, size = 0x12000, scoped, tag = 'internal scratch']
  #allocation2 [shape = 'f32[36,144]{1,0:T(8,128)}', space=vmem, size = 0xa000, scoped, tag = 'scratch operand']
  #allocation3 [shape = 'f32[32,432]{1,0:T(8,128)}', space=vmem, size = 0x10000, scoped, tag = 'scratch operand']
  %s0 = inlined_call_operand.vmem [shape: f32[32,128], index: 0, kind: input, shape index: {}]
  %s1 = inlined_call_operand.vmem [shape: f32[432,128], index: 1, kind: input, shape index: {}]
  %s2 = inlined_call_operand.vmem [shape: f32[432,128], index: 2, kind: input, shape index: {}]
  %s3 = inlined_call_operand.vmem [shape: f32[1,128], index: 3, kind: input, shape index: {}]
  %s4 = inlined_call_operand.vmem [shape: f32[1,128], index: 4, kind: input, shape index: {}]
  %s5 = inlined_call_operand.vmem [shape: f32[1,128], index: 5, kind: input, shape index: {}]
  %s6 = inlined_call_operand.vmem [shape: f32[1,128], index: 6, kind: input, shape index: {}]
  %s7 = inlined_call_operand.vmem [shape: f32[128,128], index: 7, kind: input, shape index: {}]
  %s8 = inlined_call_operand.vmem [shape: f32[32,128], index: 8, kind: output, shape index: {}]
  %s9 = sld [smem:[#allocation0]]
  $region42: #{rs_block_forward.1} parent=0
    _
  %s11 = ssub.s32 1, %s9
  %s12 = scalar_select 0, %s11, %s9
  // Predicated region
  $region2: #{rs_block_forward.1} parent=0 // pred_check
    _
  $region3: #{rs_block_forward.1} parent=0 // pred_check_branch
    %14 = sbr.rel (0) target = $region5
  $region4: #{rs_block_forward.1} parent=0 // pred_region
    _
  $region5: #{rs_block_forward.1} parent=0 // pred_fallthru
    _
  // Predicated region
  $region6: #{rs_block_forward.1} parent=0 // pred_check
    _
  $region7: #{rs_block_forward.1} parent=0 // pred_check_branch
    %16 = sbr.rel (0) target = $region9
  $region8: #{rs_block_forward.1} parent=0 // pred_region
    _
  $region9: #{rs_block_forward.1} parent=0 // pred_fallthru
    _
  // Predicated region
  $region10: #{rs_block_forward.1} parent=0 // pred_check
    _
  $region11: #{rs_block_forward.1} parent=0 // pred_check_branch
    %18 = sbr.rel (0) target = $region13
  $region12: #{rs_block_forward.1} parent=0 // pred_region
    _
  $region13: #{rs_block_forward.1} parent=0 // pred_fallthru
    _
  // Predicated region
  $region14: #{rs_block_forward.1} parent=0 // pred_check
    _
  $region15: #{rs_block_forward.1} parent=0 // pred_check_branch
    %20 = sbr.rel (0) target = $region17
  $region16: #{rs_block_forward.1} parent=0 // pred_region
    _
  $region17: #{rs_block_forward.1} parent=0 // pred_fallthru
    _
  // Predicated region
  $region18: #{rs_block_forward.1} parent=0 // pred_check
    _
  $region19: #{rs_block_forward.1} parent=0 // pred_check_branch
    %22 = sbr.rel (0) target = $region21
  $region20: #{rs_block_forward.1} parent=0 // pred_region
    _
  $region21: #{rs_block_forward.1} parent=0 // pred_fallthru
    _
  // Predicated region
  $region22: #{rs_block_forward.1} parent=0 // pred_check
    _
  $region23: #{rs_block_forward.1} parent=0 // pred_check_branch
    %24 = sbr.rel (0) target = $region25
  $region24: #{rs_block_forward.1} parent=0 // pred_region
    _
  $region25: #{rs_block_forward.1} parent=0 // pred_fallthru
    _
  // Predicated region
  $region26: #{rs_block_forward.1} parent=0 // pred_check
    _
  $region27: #{rs_block_forward.1} parent=0 // pred_check_branch
    %26 = sbr.rel (0) target = $region29
  $region28: #{rs_block_forward.1} parent=0 // pred_region
    _
  $region29: #{rs_block_forward.1} parent=0 // pred_fallthru
    _
  // Predicated region
  $region30: #{rs_block_forward.1} parent=0 // pred_check
    _
  $region31: #{rs_block_forward.1} parent=0 // pred_check_branch
    %28 = sbr.rel (0) target = $region33
  $region32: #{rs_block_forward.1} parent=0 // pred_region
    _
  $region33: #{rs_block_forward.1} parent=0 // pred_fallthru
    _
  %29 = vst [vmem:[#allocation2] sm:$0xff] 0.0
  %vm30 = vcmask 130048
  %31 = vst.msk [vmem:[#allocation2 + $0x8] sm:$0xff] %vm30, 0.0
  %32 = vst [vmem:[#allocation2 + $0x10] sm:$0xff] 0.0
  %33 = vst.msk [vmem:[#allocation2 + $0x18] sm:$0xff] %vm30, 0.0
  %34 = vst [vmem:[#allocation2 + $0x20] sm:$0xff] 0.0
  %35 = vst.msk [vmem:[#allocation2 + $0x28] sm:$0xff] %vm30, 0.0
  %36 = vst [vmem:[#allocation2 + $0x30] sm:$0xff] 0.0
  %37 = vst.msk [vmem:[#allocation2 + $0x38] sm:$0xff] %vm30, 0.0
  %38 = vst [vmem:[#allocation2 + $0x40] sm:$0xf] 0.0
  %vm39 = vcmask 125952
  %40 = vst.msk [vmem:[#allocation2 + $0x48] sm:$0xf] %vm39, 0.0
  %v41 = vld [vmem:[%s0] sm:$0xff]
  %v42 = vld [vmem:[%s0 + $0x8] sm:$0xff]
  %v43 = vld [vmem:[%s0 + $0x10] sm:$0xff]
  %v44 = vld [vmem:[%s0 + $0x18] sm:$0xff]
  %vm47 = vcmask 1040384
  %v48 = vrot.slane %v41, 7
  %v49 = vrot.slane %v42, 7
  %v50 = vsel %vm47, %v48, %v49
  %54 = vst [vmem:[#allocation2] sm:$0xfe] %v48
  %55 = vst [vmem:[#allocation2 + $0x10] sm:$0xff] %v50
  %56 = vst [vmem:[#allocation2 + $0x20] sm:$0x1] %v49
  %vm59 = vcmask 1042432
  %v60 = vrot.slane %v43, 5
  %v61 = vrot.slane %v44, 5
  %v62 = vsel %vm59, %v60, %v61
  %66 = vst [vmem:[#allocation2 + $0x20] sm:$0xf8] %v60
  %67 = vst [vmem:[#allocation2 + $0x30] sm:$0xff] %v62
  %68 = vst [vmem:[#allocation2 + $0x40] sm:$0x7] %v61
  %v69 = vld [vmem:[#allocation2] sm:$0xff]
  %v70 = vld [vmem:[#allocation2 + $0x8] sm:$0xff]
  %v71 = vld [vmem:[#allocation2 + $0x10] sm:$0xff]
  %v72 = vld [vmem:[#allocation2 + $0x18] sm:$0xff]
  %73 = vst [vmem:[#allocation3] sm:$0xff] %v69
  %74 = vst.msk [vmem:[#allocation3 + $0x8] sm:$0xff] %vm30, %v70
  %75 = vst [vmem:[#allocation3 + $0x20] sm:$0xff] %v71
  %76 = vst.msk [vmem:[#allocation3 + $0x28] sm:$0xff] %vm30, %v72
  %v77 = vld [vmem:[#allocation2 + $0x20] sm:$0xfc]
  %v78 = vld [vmem:[#allocation2 + $0x28] sm:$0xfc]
  %v79 = vld [vmem:[#allocation2 + $0x30] sm:$0xff]
  %v80 = vld [vmem:[#allocation2 + $0x38] sm:$0xff]
  %v81 = vld [vmem:[#allocation2 + $0x40] sm:$0x3]
  %v82 = vld [vmem:[#allocation2 + $0x48] sm:$0x3]
  %vm89 = vcmask 1045504
  %v90 = vrot.slane %v77, 2
  %v91 = vrot.slane %v79, 2
  %v92 = vsel %vm89, %v90, %v91
  %v93 = vrot.slane %v78, 2
  %v94 = vrot.slane %v80, 2
  %v95 = vsel %vm89, %v93, %v94
  %v96 = vrot.slane %v81, 2
  %v97 = vsel %vm89, %v91, %v96
  %v98 = vrot.slane %v82, 2
  %v99 = vsel %vm89, %v94, %v98
  %104 = vst [vmem:[#allocation3 + $0x40] sm:$0xff] %v92
  %105 = vst.msk [vmem:[#allocation3 + $0x48] sm:$0xff] %vm30, %v95
  %106 = vst [vmem:[#allocation3 + $0x60] sm:$0xff] %v97
  %107 = vst.msk [vmem:[#allocation3 + $0x68] sm:$0xff] %vm30, %v99
  %v108 = vld [vmem:[#allocation2] sm:$0xfe]
  %v109 = vld [vmem:[#allocation2 + $0x8] sm:$0xfe]
  %v110 = vld [vmem:[#allocation2 + $0x10] sm:$0xff]
  %v111 = vld [vmem:[#allocation2 + $0x18] sm:$0xff]
  %v112 = vld [vmem:[#allocation2 + $0x20] sm:$0x1]
  %v113 = vld [vmem:[#allocation2 + $0x28] sm:$0x1]
  %vm120 = vcmask 1046528
  %v121 = vrot.slane %v108, 1
  %v122 = vrot.slane %v110, 1
  %v123 = vsel %vm120, %v121, %v122
  %v124 = vrot.slane %v109, 1
  %v125 = vrot.slane %v111, 1
  %v126 = vsel %vm120, %v124, %v125
  %v127 = vrot.slane %v112, 1
  %v128 = vsel %vm120, %v122, %v127
  %v129 = vrot.slane %v113, 1
  %v130 = vsel %vm120, %v125, %v129
  %131 = vrot.lane.b32.xlu0 %v123, 16
  %v132 = vpop.permute.xlu0 %131
  %133 = vrot.lane.b32.xlu0 %v126, 16
  %v134 = vpop.permute.xlu0 %133
  %135 = vrot.lane.b32.xlu0 %v128, 16
  %v136 = vpop.permute.xlu0 %135
  %137 = vrot.lane.b32.xlu0 %v130, 16
  %v138 = vpop.permute.xlu0 %137
  %v139 = vsel %vm30, %v132, %v134
  %v140 = vsel %vm30, %v136, %v138
  %vm145 = vcmask 1047680
  %146 = vst.msk [vmem:[#allocation3 + $0x8] sm:$0xff] %vm145, %v132
  %vm147 = vcmask 261120
  %148 = vst.msk [vmem:[#allocation3 + $0x10] sm:$0xff] %vm147, %v139
  %149 = vst.msk [vmem:[#allocation3 + $0x28] sm:$0xff] %vm145, %v136
  %150 = vst.msk [vmem:[#allocation3 + $0x30] sm:$0xff] %vm147, %v140
  %v151 = vld [vmem:[#allocation2 + $0x20] sm:$0xf8]
  %v152 = vld [vmem:[#allocation2 + $0x28] sm:$0xf8]
  %v153 = vld [vmem:[#allocation2 + $0x30] sm:$0xff]
  %v154 = vld [vmem:[#allocation2 + $0x38] sm:$0xff]
  %v155 = vld [vmem:[#allocation2 + $0x40] sm:$0x7]
  %v156 = vld [vmem:[#allocation2 + $0x48] sm:$0x7]
  %vm163 = vcmask 1044480
  %v164 = vrot.slane %v151, 3
  %v165 = vrot.slane %v153, 3
  %v166 = vsel %vm163, %v164, %v165
  %v167 = vrot.slane %v152, 3
  %v168 = vrot.slane %v154, 3
  %v169 = vsel %vm163, %v167, %v168
  %v170 = vrot.slane %v155, 3
  %v171 = vsel %vm163, %v165, %v170
  %v172 = vrot.slane %v156, 3
  %v173 = vsel %vm163, %v168, %v172
  %174 = vrot.lane.b32.xlu0 %v166, 16
  %v175 = vpop.permute.xlu0 %174
  %176 = vrot.lane.b32.xlu0 %v169, 16
  %v177 = vpop.permute.xlu0 %176
  %178 = vrot.lane.b32.xlu0 %v171, 16
  %v179 = vpop.permute.xlu0 %178
  %180 = vrot.lane.b32.xlu0 %v173, 16
  %v181 = vpop.permute.xlu0 %180
  %v182 = vsel %vm30, %v175, %v177
  %v183 = vsel %vm30, %v179, %v181
  %188 = vst.msk [vmem:[#allocation3 + $0x48] sm:$0xff] %vm145, %v175
  %189 = vst.msk [vmem:[#allocation3 + $0x50] sm:$0xff] %vm147, %v182
  %190 = vst.msk [vmem:[#allocation3 + $0x68] sm:$0xff] %vm145, %v179
  %191 = vst.msk [vmem:[#allocation3 + $0x70] sm:$0xff] %vm147, %v183
  %v192 = vld [vmem:[#allocation2] sm:$0xfc]
  %v193 = vld [vmem:[#allocation2 + $0x8] sm:$0xfc]
  %v194 = vld [vmem:[#allocation2 + $0x10] sm:$0xff]
  %v195 = vld [vmem:[#allocation2 + $0x18] sm:$0xff]
  %v196 = vld [vmem:[#allocation2 + $0x20] sm:$0x3]
  %v197 = vld [vmem:[#allocation2 + $0x28] sm:$0x3]
  %v204 = vrot.slane %v192, 2
  %v205 = vrot.slane %v194, 2
  %v206 = vsel %vm89, %v204, %v205
  %v207 = vrot.slane %v193, 2
  %v208 = vrot.slane %v195, 2
  %v209 = vsel %vm89, %v207, %v208
  %v210 = vrot.slane %v196, 2
  %v211 = vsel %vm89, %v205, %v210
  %v212 = vrot.slane %v197, 2
  %v213 = vsel %vm89, %v208, %v212
  %214 = vrot.lane.b32.xlu0 %v206, 32
  %v215 = vpop.permute.xlu0 %214
  %216 = vrot.lane.b32.xlu0 %v209, 32
  %v217 = vpop.permute.xlu0 %216
  %218 = vrot.lane.b32.xlu0 %v211, 32
  %v219 = vpop.permute.xlu0 %218
  %220 = vrot.lane.b32.xlu0 %v213, 32
  %v221 = vpop.permute.xlu0 %220
  %v222 = vsel %vm147, %v215, %v217
  %v223 = vsel %vm147, %v219, %v221
  %vm228 = vcmask 1047808
  %229 = vst.msk [vmem:[#allocation3 + $0x10] sm:$0xff] %vm228, %v215
  %vm230 = vcmask 392192
  %231 = vst.msk [vmem:[#allocation3 + $0x18] sm:$0xff] %vm230, %v222
  %232 = vst.msk [vmem:[#allocation3 + $0x30] sm:$0xff] %vm228, %v219
  %233 = vst.msk [vmem:[#allocation3 + $0x38] sm:$0xff] %vm230, %v223
  %v234 = vld [vmem:[#allocation2 + $0x20] sm:$0xf0]
  %v235 = vld [vmem:[#allocation2 + $0x28] sm:$0xf0]
  %v236 = vld [vmem:[#allocation2 + $0x30] sm:$0xff]
  %v237 = vld [vmem:[#allocation2 + $0x38] sm:$0xff]
  %v238 = vld [vmem:[#allocation2 + $0x40] sm:$0xf]
  %v239 = vld [vmem:[#allocation2 + $0x48] sm:$0xf]
  %vm246 = vcmask 1043456
  %v247 = vrot.slane %v234, 4
  %v248 = vrot.slane %v236, 4
  %v249 = vsel %vm246, %v247, %v248
  %v250 = vrot.slane %v235, 4
  %v251 = vrot.slane %v237, 4
  %v252 = vsel %vm246, %v250, %v251
  %v253 = vrot.slane %v238, 4
  %v254 = vsel %vm246, %v248, %v253
  %v255 = vrot.slane %v239, 4
  %v256 = vsel %vm246, %v251, %v255
  %257 = vrot.lane.b32.xlu0 %v249, 32
  %v258 = vpop.permute.xlu0 %257
  %259 = vrot.lane.b32.xlu0 %v252, 32
  %v260 = vpop.permute.xlu0 %259
  %261 = vrot.lane.b32.xlu0 %v254, 32
  %v262 = vpop.permute.xlu0 %261
  %263 = vrot.lane.b32.xlu0 %v256, 32
  %v264 = vpop.permute.xlu0 %263
  %v265 = vsel %vm147, %v258, %v260
  %v266 = vsel %vm147, %v262, %v264
  %271 = vst.msk [vmem:[#allocation3 + $0x50] sm:$0xff] %vm228, %v258
  %272 = vst.msk [vmem:[#allocation3 + $0x58] sm:$0xff] %vm230, %v265
  %273 = vst.msk [vmem:[#allocation3 + $0x70] sm:$0xff] %vm228, %v262
  %274 = vst.msk [vmem:[#allocation3 + $0x78] sm:$0xff] %vm230, %v266
  %v275 = vld [vmem:[#allocation3] sm:$0xff]
  %v276 = vld [vmem:[#allocation3 + $0x8] sm:$0xff]
  %v277 = vld [vmem:[#allocation3 + $0x10] sm:$0xff]
  %v278 = vld [vmem:[#allocation3 + $0x18] sm:$0xff]
  %v279 = vld [vmem:[#allocation3 + $0x20] sm:$0xff]
  %v280 = vld [vmem:[#allocation3 + $0x28] sm:$0xff]
  %v281 = vld [vmem:[#allocation3 + $0x30] sm:$0xff]
  %v282 = vld [vmem:[#allocation3 + $0x38] sm:$0xff]
  %v283 = vld [vmem:[#allocation3 + $0x40] sm:$0xff]
  %v284 = vld [vmem:[#allocation3 + $0x48] sm:$0xff]
  %v285 = vld [vmem:[#allocation3 + $0x50] sm:$0xff]
  %v286 = vld [vmem:[#allocation3 + $0x58] sm:$0xff]
  %v287 = vld [vmem:[#allocation3 + $0x60] sm:$0xff]
  %v288 = vld [vmem:[#allocation3 + $0x68] sm:$0xff]
  %v289 = vld [vmem:[#allocation3 + $0x70] sm:$0xff]
  %v290 = vld [vmem:[#allocation3 + $0x78] sm:$0xff]
  %v291 = vld [vmem:[%s1] sm:$0xff]
  %v292 = vld [vmem:[%s1 + $0x8] sm:$0xff]
  %v293 = vld [vmem:[%s1 + $0x10] sm:$0xff]
  %v294 = vld [vmem:[%s1 + $0x18] sm:$0xff]
  %v295 = vld [vmem:[%s1 + $0x20] sm:$0xff]
  %v296 = vld [vmem:[%s1 + $0x28] sm:$0xff]
  %v297 = vld [vmem:[%s1 + $0x30] sm:$0xff]
  %v298 = vld [vmem:[%s1 + $0x38] sm:$0xff]
  %v299 = vld [vmem:[%s1 + $0x40] sm:$0xff]
  %v300 = vld [vmem:[%s1 + $0x48] sm:$0xff]
  %v301 = vld [vmem:[%s1 + $0x50] sm:$0xff]
  %v302 = vld [vmem:[%s1 + $0x58] sm:$0xff]
  %v303 = vld [vmem:[%s1 + $0x60] sm:$0xff]
  %v304 = vld [vmem:[%s1 + $0x68] sm:$0xff]
  %v305 = vld [vmem:[%s1 + $0x70] sm:$0xff]
  %v306 = vld [vmem:[%s1 + $0x78] sm:$0xff]
  %v307 = vld [vmem:[%s1 + $0x80] sm:$0xff]
  %v308 = vld [vmem:[%s1 + $0x88] sm:$0xff]
  %v309 = vld [vmem:[%s1 + $0x90] sm:$0xff]
  %v310 = vld [vmem:[%s1 + $0x98] sm:$0xff]
  %v311 = vld [vmem:[%s1 + $0xa0] sm:$0xff]
  %v312 = vld [vmem:[%s1 + $0xa8] sm:$0xff]
  %v313 = vld [vmem:[%s1 + $0xb0] sm:$0xff]
  %v314 = vld [vmem:[%s1 + $0xb8] sm:$0xff]
  %v315 = vld [vmem:[%s1 + $0xc0] sm:$0xff]
  %v316 = vld [vmem:[%s1 + $0xc8] sm:$0xff]
  %v317 = vld [vmem:[%s1 + $0xd0] sm:$0xff]
  %v318 = vld [vmem:[%s1 + $0xd8] sm:$0xff]
  %v319 = vld [vmem:[%s1 + $0xe0] sm:$0xff]
  %v320 = vld [vmem:[%s1 + $0xe8] sm:$0xff]
  %v321 = vld [vmem:[%s1 + $0xf0] sm:$0xff]
  %v322 = vld [vmem:[%s1 + $0xf8] sm:$0xff]
  %v323 = vld [vmem:[%s1 + $0x100] sm:$0xff]
  %v324 = vld [vmem:[%s1 + $0x108] sm:$0xff]
  %v325 = vld [vmem:[%s1 + $0x110] sm:$0xff]
  %v326 = vld [vmem:[%s1 + $0x118] sm:$0xff]
  %v327 = vld [vmem:[%s1 + $0x120] sm:$0xff]
  %v328 = vld [vmem:[%s1 + $0x128] sm:$0xff]
  %v329 = vld [vmem:[%s1 + $0x130] sm:$0xff]
  %v330 = vld [vmem:[%s1 + $0x138] sm:$0xff]
  %v331 = vld [vmem:[%s1 + $0x140] sm:$0xff]
  %v332 = vld [vmem:[%s1 + $0x148] sm:$0xff]
  %v333 = vld [vmem:[%s1 + $0x150] sm:$0xff]
  %v334 = vld [vmem:[%s1 + $0x158] sm:$0xff]
  %v335 = vld [vmem:[%s1 + $0x160] sm:$0xff]
  %v336 = vld [vmem:[%s1 + $0x168] sm:$0xff]
  %v337 = vld [vmem:[%s1 + $0x170] sm:$0xff]
  %v338 = vld [vmem:[%s1 + $0x178] sm:$0xff]
  %v339 = vld [vmem:[%s1 + $0x180] sm:$0xff]
  %v340 = vld [vmem:[%s1 + $0x188] sm:$0xff]
  %v341 = vld [vmem:[%s1 + $0x190] sm:$0xff]
  %v342 = vld [vmem:[%s1 + $0x198] sm:$0xff]
  %v343 = vld [vmem:[%s1 + $0x1a0] sm:$0xff]
  %v344 = vld [vmem:[%s1 + $0x1a8] sm:$0xff]
  %v346 = vsel %vm230, %v278, 0
  %v349 = vsel %vm230, %v282, 0
  %v352 = vsel %vm230, %v286, 0
  %v355 = vsel %vm230, %v290, 0
  %357 = vmatprep.subr.mxu0 0.0
  %358 = vmatpush1.msra.mxu0 %v291
  %359 = vmatprep.subr.mxu0 0.0
  %360 = vmatpush1.msra.mxu0 %v292
  %361 = vmatprep.subr.mxu0 0.0
  %362 = vmatpush1.msra.mxu0 %v293
  %363 = vmatprep.subr.mxu0 0.0
  %364 = vmatpush1.msra.mxu0 %v294
  %365 = vmatprep.subr.mxu0 0.0
  %366 = vmatpush1.msra.mxu0 %v295
  %367 = vmatprep.subr.mxu0 0.0
  %368 = vmatpush1.msra.mxu0 %v296
  %369 = vmatprep.subr.mxu0 0.0
  %370 = vmatpush1.msra.mxu0 %v297
  %371 = vmatprep.subr.mxu0 0.0
  %372 = vmatpush1.msra.mxu0 %v298
  %373 = vmatprep.subr.mxu0 0.0
  %374 = vmatpush1.msra.mxu0 %v299
  %375 = vmatprep.subr.mxu0 0.0
  %376 = vmatpush1.msra.mxu0 %v300
  %377 = vmatprep.subr.mxu0 0.0
  %378 = vmatpush1.msra.mxu0 %v301
  %379 = vmatprep.subr.mxu0 0.0
  %380 = vmatpush1.msra.mxu0 %v302
  %381 = vmatprep.subr.mxu0 0.0
  %382 = vmatpush1.msra.mxu0 %v303
  %383 = vmatprep.subr.mxu0 0.0
  %384 = vmatpush1.msra.mxu0 %v304
  %385 = vmatprep.subr.mxu0 0.0
  %386 = vmatpush1.msra.mxu0 %v305
  %387 = vmatprep.subr.mxu0 0.0
  %388 = vmatpush1.msra.mxu0 %v306
  %389 = vmatprep.subr.mxu0 0.0
  %390 = vmatpush1.msra.mxu0 %v307
  %391 = vmatprep.subr.mxu0 0.0
  %392 = vmatpush1.msra.mxu0 %v308
  %393 = vmatprep.subr.mxu0 0.0
  %394 = vmatpush1.msra.mxu0 %v309
  %395 = vmatprep.subr.mxu0 0.0
  %396 = vmatpush1.msra.mxu0 %v310
  %397 = vmatprep.subr.mxu0 0.0
  %398 = vmatpush1.msra.mxu0 %v311
  %399 = vmatprep.subr.mxu0 0.0
  %400 = vmatpush1.msra.mxu0 %v312
  %401 = vmatprep.subr.mxu0 0.0
  %402 = vmatpush1.msra.mxu0 %v313
  %403 = vmatprep.subr.mxu0 0.0
  %404 = vmatpush1.msra.mxu0 %v314
  %405 = vmatprep.subr.mxu0 0.0
  %406 = vmatpush1.msra.mxu0 %v315
  %407 = vmatprep.subr.mxu0 0.0
  %408 = vmatpush1.msra.mxu0 %v316
  %409 = vmatprep.subr.mxu0 0.0
  %410 = vmatpush1.msra.mxu0 %v317
  %411 = vmatprep.subr.mxu0 0.0
  %412 = vmatpush1.msra.mxu0 %v318
  %413 = vmatprep.subr.mxu0 0.0
  %414 = vmatpush1.msra.mxu0 %v319
  %415 = vmatprep.subr.mxu0 0.0
  %416 = vmatpush1.msra.mxu0 %v320
  %417 = vmatprep.subr.mxu0 0.0
  %418 = vmatpush1.msra.mxu0 %v321
  %419 = vmatprep.subr.mxu0 0.0
  %420 = vmatpush1.msra.mxu0 %v322
  %421 = vmatprep.mubr.f32.mxu0 %v276
  %422 = vmatmul.mubr.f32.gmra.mrb[0].mxu0 %v275
  %v423 = vpop.f32.mrb[0].mxu0
  %v424 = vadd.f32 0.0, %v423
  %v425 = vpop.f32.mrb[0].mxu0
  %426 = vmatprep.mubr.f32.mxu0 %v280
  %427 = vmatmul.mubr.f32.gmra.mrb[0].mxu0 %v279
  %v428 = vpop.f32.mrb[0].mxu0
  %v429 = vadd.f32 0.0, %v428
  %v430 = vpop.f32.mrb[0].mxu0
  %431 = vmatprep.mubr.f32.mxu0 %v284
  %432 = vmatmul.mubr.f32.gmra.mrb[0].mxu0 %v283
  %v433 = vpop.f32.mrb[0].mxu0
  %v434 = vadd.f32 0.0, %v433
  %v435 = vpop.f32.mrb[0].mxu0
  %436 = vmatprep.mubr.f32.mxu0 %v288
  %437 = vmatmul.mubr.f32.gmra.mrb[0].mxu0 %v287
  %v438 = vpop.f32.mrb[0].mxu0
  %v439 = vadd.f32 0.0, %v438
  %v440 = vpop.f32.mrb[0].mxu0
  %441 = vdwg.mxu0
  %442 = vmatprep.subr.mxu0 0.0
  %443 = vmatpush1.msra.mxu0 %v323
  %444 = vmatprep.subr.mxu0 0.0
  %445 = vmatpush1.msra.mxu0 %v324
  %446 = vmatprep.subr.mxu0 0.0
  %447 = vmatpush1.msra.mxu0 %v325
  %448 = vmatprep.subr.mxu0 0.0
  %449 = vmatpush1.msra.mxu0 %v326
  %450 = vmatprep.subr.mxu0 0.0
  %451 = vmatpush1.msra.mxu0 %v327
  %452 = vmatprep.subr.mxu0 0.0
  %453 = vmatpush1.msra.mxu0 %v328
  %454 = vmatprep.subr.mxu0 0.0
  %455 = vmatpush1.msra.mxu0 %v329
  %456 = vmatprep.subr.mxu0 0.0
  %457 = vmatpush1.msra.mxu0 %v330
  %458 = vmatprep.subr.mxu0 0.0
  %459 = vmatpush1.msra.mxu0 %v331
  %460 = vmatprep.subr.mxu0 0.0
  %461 = vmatpush1.msra.mxu0 %v332
  %462 = vmatprep.subr.mxu0 0.0
  %463 = vmatpush1.msra.mxu0 %v333
  %464 = vmatprep.subr.mxu0 0.0
  %465 = vmatpush1.msra.mxu0 %v334
  %466 = vmatprep.subr.mxu0 0.0
  %467 = vmatpush1.msra.mxu0 %v335
  %468 = vmatprep.subr.mxu0 0.0
  %469 = vmatpush1.msra.mxu0 %v336
  %470 = vmatprep.subr.mxu0 0.0
  %471 = vmatpush1.msra.mxu0 %v337
  %472 = vmatprep.subr.mxu0 0.0
  %473 = vmatpush1.msra.mxu0 %v338
  %474 = vmatprep.subr.mxu0 0.0
  %475 = vmatpush1.msra.mxu0 %v339
  %476 = vmatprep.subr.mxu0 0.0
  %477 = vmatpush1.msra.mxu0 %v340
  %478 = vmatprep.subr.mxu0 0.0
  %479 = vmatpush1.msra.mxu0 %v341
  %480 = vmatprep.subr.mxu0 0.0
  %481 = vmatpush1.msra.mxu0 %v342
  %482 = vmatprep.subr.mxu0 0.0
  %483 = vmatpush1.msra.mxu0 %v343
  %484 = vmatprep.subr.mxu0 0.0
  %485 = vmatpush1.msra.mxu0 %v344
  %486 = vmatprep.subr.mxu0 0.0
  %487 = vmatpush1.msra.mxu0 0.0
  %488 = vmatprep.subr.mxu0 0.0
  %489 = vmatpush1.msra.mxu0 0.0
  %490 = vmatprep.subr.mxu0 0.0
  %491 = vmatpush1.msra.mxu0 0.0
  %492 = vmatprep.subr.mxu0 0.0
  %493 = vmatpush1.msra.mxu0 0.0
  %494 = vmatprep.subr.mxu0 0.0
  %495 = vmatpush1.msra.mxu0 0.0
  %496 = vmatprep.subr.mxu0 0.0
  %497 = vmatpush1.msra.mxu0 0.0
  %498 = vmatprep.subr.mxu0 0.0
  %499 = vmatpush1.msra.mxu0 0.0
  %500 = vmatprep.subr.mxu0 0.0
  %501 = vmatpush1.msra.mxu0 0.0
  %502 = vmatprep.subr.mxu0 0.0
  %503 = vmatpush1.msra.mxu0 0.0
  %504 = vmatprep.subr.mxu0 0.0
  %505 = vmatpush1.msra.mxu0 0.0
  %506 = vmatprep.mubr.f32.mxu0 %v346
  %507 = vmatmul.mubr.f32.gmra.mrb[0].mxu0 %v277
  %v508 = vpop.f32.mrb[0].mxu0
  %v509 = vadd.f32 %v424, %v508
  %v510 = vpop.f32.mrb[0].mxu0
  %511 = vmatprep.mubr.f32.mxu0 %v349
  %512 = vmatmul.mubr.f32.gmra.mrb[0].mxu0 %v281
  %v513 = vpop.f32.mrb[0].mxu0
  %v514 = vadd.f32 %v429, %v513
  %v515 = vpop.f32.mrb[0].mxu0
  %516 = vmatprep.mubr.f32.mxu0 %v352
  %517 = vmatmul.mubr.f32.gmra.mrb[0].mxu0 %v285
  %v518 = vpop.f32.mrb[0].mxu0
  %v519 = vadd.f32 %v434, %v518
  %v520 = vpop.f32.mrb[0].mxu0
  %521 = vmatprep.mubr.f32.mxu0 %v355
  %522 = vmatmul.mubr.f32.gmra.mrb[0].mxu0 %v289
  %v523 = vpop.f32.mrb[0].mxu0
  %v524 = vadd.f32 %v439, %v523
  %v525 = vpop.f32.mrb[0].mxu0
  %526 = vdwg.mxu0
  %v527 = vld [vmem:[%s3] sm:$0x1]
  %v528 = vld [vmem:[%s4] sm:$0x1]
  %v529 = vadd.f32 %v509, %v514
  %v530 = vadd.f32 %v529, %v519
  %v531 = vadd.f32 %v530, %v524
  %v532 = vrot.slane %v531, 4
  %v533 = vadd.f32 %v531, %v532
  %v534 = vrot.slane %v533, 2
  %v535 = vadd.f32 %v533, %v534
  %v536 = vrot.slane %v535, 1
  %v537 = vadd.f32 %v535, %v536
  %v538 = vld [vmem:[%s7] sm:$0xff]
  %v539 = vld [vmem:[%s7 + $0x8] sm:$0xff]
  %v540 = vld [vmem:[%s7 + $0x10] sm:$0xff]
  %v541 = vld [vmem:[%s7 + $0x18] sm:$0xff]
  %v542 = vld [vmem:[%s7 + $0x20] sm:$0xff]
  %v543 = vld [vmem:[%s7 + $0x28] sm:$0xff]
  %v544 = vld [vmem:[%s7 + $0x30] sm:$0xff]
  %v545 = vld [vmem:[%s7 + $0x38] sm:$0xff]
  %v546 = vld [vmem:[%s7 + $0x40] sm:$0xff]
  %v547 = vld [vmem:[%s7 + $0x48] sm:$0xff]
  %v548 = vld [vmem:[%s7 + $0x50] sm:$0xff]
  %v549 = vld [vmem:[%s7 + $0x58] sm:$0xff]
  %v550 = vld [vmem:[%s7 + $0x60] sm:$0xff]
  %v551 = vld [vmem:[%s7 + $0x68] sm:$0xff]
  %v552 = vld [vmem:[%s7 + $0x70] sm:$0xff]
  %v553 = vld [vmem:[%s7 + $0x78] sm:$0xff]
  %554 = vmatprep.subr.mxu0 0.0
  %555 = vmatpush1.msra.mxu0 %v538
  %556 = vmatprep.subr.mxu0 0.0
  %557 = vmatpush1.msra.mxu0 %v539
  %558 = vmatprep.subr.mxu0 0.0
  %559 = vmatpush1.msra.mxu0 %v540
  %560 = vmatprep.subr.mxu0 0.0
  %561 = vmatpush1.msra.mxu0 %v541
  %562 = vmatprep.subr.mxu0 0.0
  %563 = vmatpush1.msra.mxu0 %v542
  %564 = vmatprep.subr.mxu0 0.0
  %565 = vmatpush1.msra.mxu0 %v543
  %566 = vmatprep.subr.mxu0 0.0
  %567 = vmatpush1.msra.mxu0 %v544
  %568 = vmatprep.subr.mxu0 0.0
  %569 = vmatpush1.msra.mxu0 %v545
  %570 = vmatprep.subr.mxu0 0.0
  %571 = vmatpush1.msra.mxu0 %v546
  %572 = vmatprep.subr.mxu0 0.0
  %573 = vmatpush1.msra.mxu0 %v547
  %574 = vmatprep.subr.mxu0 0.0
  %575 = vmatpush1.msra.mxu0 %v548
  %576 = vmatprep.subr.mxu0 0.0
  %577 = vmatpush1.msra.mxu0 %v549
  %578 = vmatprep.subr.mxu0 0.0
  %579 = vmatpush1.msra.mxu0 %v550
  %580 = vmatprep.subr.mxu0 0.0
  %581 = vmatpush1.msra.mxu0 %v551
  %582 = vmatprep.subr.mxu0 0.0
  %583 = vmatpush1.msra.mxu0 %v552
  %584 = vmatprep.subr.mxu0 0.0
  %585 = vmatpush1.msra.mxu0 %v553
  %586 = vmatprep.subr.mxu0 0.0
  %587 = vmatpush1.msra.mxu0 0.0
  %588 = vmatprep.subr.mxu0 0.0
  %589 = vmatpush1.msra.mxu0 0.0
  %590 = vmatprep.subr.mxu0 0.0
  %591 = vmatpush1.msra.mxu0 0.0
  %592 = vmatprep.subr.mxu0 0.0
  %593 = vmatpush1.msra.mxu0 0.0
  %594 = vmatprep.subr.mxu0 0.0
  %595 = vmatpush1.msra.mxu0 0.0
  %596 = vmatprep.subr.mxu0 0.0
  %597 = vmatpush1.msra.mxu0 0.0
  %598 = vmatprep.subr.mxu0 0.0
  %599 = vmatpush1.msra.mxu0 0.0
  %600 = vmatprep.subr.mxu0 0.0
  %601 = vmatpush1.msra.mxu0 0.0
  %602 = vmatprep.subr.mxu0 0.0
  %603 = vmatpush1.msra.mxu0 0.0
  %604 = vmatprep.subr.mxu0 0.0
  %605 = vmatpush1.msra.mxu0 0.0
  %606 = vmatprep.subr.mxu0 0.0
  %607 = vmatpush1.msra.mxu0 0.0
  %608 = vmatprep.subr.mxu0 0.0
  %609 = vmatpush1.msra.mxu0 0.0
  %610 = vmatprep.subr.mxu0 0.0
  %611 = vmatpush1.msra.mxu0 0.0
  %612 = vmatprep.subr.mxu0 0.0
  %613 = vmatpush1.msra.mxu0 0.0
  %614 = vmatprep.subr.mxu0 0.0
  %615 = vmatpush1.msra.mxu0 0.0
  %616 = vmatprep.subr.mxu0 0.0
  %617 = vmatpush1.msra.mxu0 0.0
  %618 = vmatprep.mubr.f32.mxu0 0.0
  %619 = vmatmul.mubr.f32.gmra.mrb[0].mxu0 %v537
  %v620 = vpop.f32.mrb[0].mxu0
  %v621 = vadd.f32 0.0, %v620
  %v622 = vpop.f32.mrb[0].mxu0
  %623 = vdwg.mxu0
  %v624 = vmul.f32 %v509, %v509
  %v625 = vmul.f32 %v514, %v514
  %v626 = vmul.f32 %v519, %v519
  %v627 = vmul.f32 %v524, %v524
  %v628 = vadd.f32 %v624, %v625
  %v629 = vadd.f32 %v628, %v626
  %v630 = vadd.f32 %v629, %v627
  %v631 = vrot.slane %v630, 4
  %v632 = vadd.f32 %v630, %v631
  %v633 = vrot.slane %v632, 2
  %v634 = vadd.f32 %v632, %v633
  %v635 = vrot.slane %v634, 1
  %v636 = vadd.f32 %v634, %v635
  %637 = vmatprep.subr.mxu0 0.0
  %638 = vmatpush1.msra.mxu0 %v538
  %639 = vmatprep.subr.mxu0 0.0
  %640 = vmatpush1.msra.mxu0 %v539
  %641 = vmatprep.subr.mxu0 0.0
  %642 = vmatpush1.msra.mxu0 %v540
  %643 = vmatprep.subr.mxu0 0.0
  %644 = vmatpush1.msra.mxu0 %v541
  %645 = vmatprep.subr.mxu0 0.0
  %646 = vmatpush1.msra.mxu0 %v542
  %647 = vmatprep.subr.mxu0 0.0
  %648 = vmatpush1.msra.mxu0 %v543
  %649 = vmatprep.subr.mxu0 0.0
  %650 = vmatpush1.msra.mxu0 %v544
  %651 = vmatprep.subr.mxu0 0.0
  %652 = vmatpush1.msra.mxu0 %v545
  %653 = vmatprep.subr.mxu0 0.0
  %654 = vmatpush1.msra.mxu0 %v546
  %655 = vmatprep.subr.mxu0 0.0
  %656 = vmatpush1.msra.mxu0 %v547
  %657 = vmatprep.subr.mxu0 0.0
  %658 = vmatpush1.msra.mxu0 %v548
  %659 = vmatprep.subr.mxu0 0.0
  %660 = vmatpush1.msra.mxu0 %v549
  %661 = vmatprep.subr.mxu0 0.0
  %662 = vmatpush1.msra.mxu0 %v550
  %663 = vmatprep.subr.mxu0 0.0
  %664 = vmatpush1.msra.mxu0 %v551
  %665 = vmatprep.subr.mxu0 0.0
  %666 = vmatpush1.msra.mxu0 %v552
  %667 = vmatprep.subr.mxu0 0.0
  %668 = vmatpush1.msra.mxu0 %v553
  %669 = vmatprep.subr.mxu0 0.0
  %670 = vmatpush1.msra.mxu0 0.0
  %671 = vmatprep.subr.mxu0 0.0
  %672 = vmatpush1.msra.mxu0 0.0
  %673 = vmatprep.subr.mxu0 0.0
  %674 = vmatpush1.msra.mxu0 0.0
  %675 = vmatprep.subr.mxu0 0.0
  %676 = vmatpush1.msra.mxu0 0.0
  %677 = vmatprep.subr.mxu0 0.0
  %678 = vmatpush1.msra.mxu0 0.0
  %679 = vmatprep.subr.mxu0 0.0
  %680 = vmatpush1.msra.mxu0 0.0
  %681 = vmatprep.subr.mxu0 0.0
  %682 = vmatpush1.msra.mxu0 0.0
  %683 = vmatprep.subr.mxu0 0.0
  %684 = vmatpush1.msra.mxu0 0.0
  %685 = vmatprep.subr.mxu0 0.0
  %686 = vmatpush1.msra.mxu0 0.0
  %687 = vmatprep.subr.mxu0 0.0
  %688 = vmatpush1.msra.mxu0 0.0
  %689 = vmatprep.subr.mxu0 0.0
  %690 = vmatpush1.msra.mxu0 0.0
  %691 = vmatprep.subr.mxu0 0.0
  %692 = vmatpush1.msra.mxu0 0.0
  %693 = vmatprep.subr.mxu0 0.0
  %694 = vmatpush1.msra.mxu0 0.0
  %695 = vmatprep.subr.mxu0 0.0
  %696 = vmatpush1.msra.mxu0 0.0
  %697 = vmatprep.subr.mxu0 0.0
  %698 = vmatpush1.msra.mxu0 0.0
  %699 = vmatprep.subr.mxu0 0.0
  %700 = vmatpush1.msra.mxu0 0.0
  %701 = vmatprep.mubr.f32.mxu0 0.0
  %702 = vmatmul.mubr.f32.gmra.mrb[0].mxu0 %v636
  %v703 = vpop.f32.mrb[0].mxu0
  %v704 = vadd.f32 0.0, %v703
  %v705 = vpop.f32.mrb[0].mxu0
  %706 = vdwg.mxu0
  %v707 = vmul.f32 %v621, 0.001953125
  %v708 = vmul.f32 %v704, 0.001953125
  %v709 = vmul.f32 %v707, %v707
  %v710 = vsub.f32 %v708, %v709
  %v711 = vmax.f32 %v710, 0.0
  %v712 = vadd.f32 %v711, 1e-05
  %v713 = vrsqrt.pop %v712
  %v714 = vmul.f32 %v527, %v713
  %v715 = vmul.f32 %v707, %v714
  %v716 = vsub.f32 %v528, %v715
  %v718 = vlaneseq
  %v719 = vshrl.u32 %v718, 7
  %v720 = vsub.s32 0, %v719
  %v721 = vrot.slane %v714, %v720
  %v723 = vmul.f32 %v509, %v721
  %v724 = vmul.f32 %v514, %v721
  %v725 = vmul.f32 %v519, %v721
  %v726 = vmul.f32 %v524, %v721
  %v728 = vlaneseq
  %v729 = vshrl.u32 %v728, 7
  %v730 = vsub.s32 0, %v729
  %v731 = vrot.slane %v716, %v730
  %v733 = vadd.f32 %v723, %v731
  %v734 = vadd.f32 %v724, %v731
  %v735 = vadd.f32 %v725, %v731
  %v736 = vadd.f32 %v726, %v731
  %v737 = vmax.f32 %v733, 0.0
  %v738 = vmax.f32 %v734, 0.0
  %v739 = vmax.f32 %v735, 0.0
  %v740 = vmax.f32 %v736, 0.0
  %v743 = vrot.slane %v737, 7
  %v744 = vrot.slane %v738, 7
  %v745 = vsel %vm47, %v743, %v744
  %749 = vst [vmem:[#allocation2] sm:$0xfe] %v743
  %750 = vst [vmem:[#allocation2 + $0x10] sm:$0xff] %v745
  %751 = vst [vmem:[#allocation2 + $0x20] sm:$0x1] %v744
  %v754 = vrot.slane %v739, 5
  %v755 = vrot.slane %v740, 5
  %v756 = vsel %vm59, %v754, %v755
  %760 = vst [vmem:[#allocation2 + $0x20] sm:$0xf8] %v754
  %761 = vst [vmem:[#allocation2 + $0x30] sm:$0xff] %v756
  %762 = vst [vmem:[#allocation2 + $0x40] sm:$0x7] %v755
  %v763 = vld [vmem:[#allocation2] sm:$0xff]
  %v764 = vld [vmem:[#allocation2 + $0x8] sm:$0xff]
  %v765 = vld [vmem:[#allocation2 + $0x10] sm:$0xff]
  %v766 = vld [vmem:[#allocation2 + $0x18] sm:$0xff]
  %767 = vst [vmem:[#allocation3] sm:$0xff] %v763
  %768 = vst.msk [vmem:[#allocation3 + $0x8] sm:$0xff] %vm30, %v764
  %769 = vst [vmem:[#allocation3 + $0x20] sm:$0xff] %v765
  %770 = vst.msk [vmem:[#allocation3 + $0x28] sm:$0xff] %vm30, %v766
  %v771 = vld [vmem:[#allocation2 + $0x20] sm:$0xfc]
  %v772 = vld [vmem:[#allocation2 + $0x28] sm:$0xfc]
  %v773 = vld [vmem:[#allocation2 + $0x30] sm:$0xff]
  %v774 = vld [vmem:[#allocation2 + $0x38] sm:$0xff]
  %v775 = vld [vmem:[#allocation2 + $0x40] sm:$0x3]
  %v776 = vld [vmem:[#allocation2 + $0x48] sm:$0x3]
  %v783 = vrot.slane %v771, 2
  %v784 = vrot.slane %v773, 2
  %v785 = vsel %vm89, %v783, %v784
  %v786 = vrot.slane %v772, 2
  %v787 = vrot.slane %v774, 2
  %v788 = vsel %vm89, %v786, %v787
  %v789 = vrot.slane %v775, 2
  %v790 = vsel %vm89, %v784, %v789
  %v791 = vrot.slane %v776, 2
  %v792 = vsel %vm89, %v787, %v791
  %797 = vst [vmem:[#allocation3 + $0x40] sm:$0xff] %v785
  %798 = vst.msk [vmem:[#allocation3 + $0x48] sm:$0xff] %vm30, %v788
  %799 = vst [vmem:[#allocation3 + $0x60] sm:$0xff] %v790
  %800 = vst.msk [vmem:[#allocation3 + $0x68] sm:$0xff] %vm30, %v792
  %v801 = vld [vmem:[#allocation2] sm:$0xfe]
  %v802 = vld [vmem:[#allocation2 + $0x8] sm:$0xfe]
  %v803 = vld [vmem:[#allocation2 + $0x10] sm:$0xff]
  %v804 = vld [vmem:[#allocation2 + $0x18] sm:$0xff]
  %v805 = vld [vmem:[#allocation2 + $0x20] sm:$0x1]
  %v806 = vld [vmem:[#allocation2 + $0x28] sm:$0x1]
  %v813 = vrot.slane %v801, 1
  %v814 = vrot.slane %v803, 1
  %v815 = vsel %vm120, %v813, %v814
  %v816 = vrot.slane %v802, 1
  %v817 = vrot.slane %v804, 1
  %v818 = vsel %vm120, %v816, %v817
  %v819 = vrot.slane %v805, 1
  %v820 = vsel %vm120, %v814, %v819
  %v821 = vrot.slane %v806, 1
  %v822 = vsel %vm120, %v817, %v821
  %823 = vrot.lane.b32.xlu0 %v815, 16
  %v824 = vpop.permute.xlu0 %823
  %825 = vrot.lane.b32.xlu0 %v818, 16
  %v826 = vpop.permute.xlu0 %825
  %827 = vrot.lane.b32.xlu0 %v820, 16
  %v828 = vpop.permute.xlu0 %827
  %829 = vrot.lane.b32.xlu0 %v822, 16
  %v830 = vpop.permute.xlu0 %829
  %v831 = vsel %vm30, %v824, %v826
  %v832 = vsel %vm30, %v828, %v830
  %837 = vst.msk [vmem:[#allocation3 + $0x8] sm:$0xff] %vm145, %v824
  %838 = vst.msk [vmem:[#allocation3 + $0x10] sm:$0xff] %vm147, %v831
  %839 = vst.msk [vmem:[#allocation3 + $0x28] sm:$0xff] %vm145, %v828
  %840 = vst.msk [vmem:[#allocation3 + $0x30] sm:$0xff] %vm147, %v832
  %v841 = vld [vmem:[#allocation2 + $0x20] sm:$0xf8]
  %v842 = vld [vmem:[#allocation2 + $0x28] sm:$0xf8]
  %v843 = vld [vmem:[#allocation2 + $0x30] sm:$0xff]
  %v844 = vld [vmem:[#allocation2 + $0x38] sm:$0xff]
  %v845 = vld [vmem:[#allocation2 + $0x40] sm:$0x7]
  %v846 = vld [vmem:[#allocation2 + $0x48] sm:$0x7]
  %v853 = vrot.slane %v841, 3
  %v854 = vrot.slane %v843, 3
  %v855 = vsel %vm163, %v853, %v854
  %v856 = vrot.slane %v842, 3
  %v857 = vrot.slane %v844, 3
  %v858 = vsel %vm163, %v856, %v857
  %v859 = vrot.slane %v845, 3
  %v860 = vsel %vm163, %v854, %v859
  %v861 = vrot.slane %v846, 3
  %v862 = vsel %vm163, %v857, %v861
  %863 = vrot.lane.b32.xlu0 %v855, 16
  %v864 = vpop.permute.xlu0 %863
  %865 = vrot.lane.b32.xlu0 %v858, 16
  %v866 = vpop.permute.xlu0 %865
  %867 = vrot.lane.b32.xlu0 %v860, 16
  %v868 = vpop.permute.xlu0 %867
  %869 = vrot.lane.b32.xlu0 %v862, 16
  %v870 = vpop.permute.xlu0 %869
  %v871 = vsel %vm30, %v864, %v866
  %v872 = vsel %vm30, %v868, %v870
  %877 = vst.msk [vmem:[#allocation3 + $0x48] sm:$0xff] %vm145, %v864
  %878 = vst.msk [vmem:[#allocation3 + $0x50] sm:$0xff] %vm147, %v871
  %879 = vst.msk [vmem:[#allocation3 + $0x68] sm:$0xff] %vm145, %v868
  %880 = vst.msk [vmem:[#allocation3 + $0x70] sm:$0xff] %vm147, %v872
  %v881 = vld [vmem:[#allocation2] sm:$0xfc]
  %v882 = vld [vmem:[#allocation2 + $0x8] sm:$0xfc]
  %v883 = vld [vmem:[#allocation2 + $0x10] sm:$0xff]
  %v884 = vld [vmem:[#allocation2 + $0x18] sm:$0xff]
  %v885 = vld [vmem:[#allocation2 + $0x20] sm:$0x3]
  %v886 = vld [vmem:[#allocation2 + $0x28] sm:$0x3]
  %v893 = vrot.slane %v881, 2
  %v894 = vrot.slane %v883, 2
  %v895 = vsel %vm89, %v893, %v894
  %v896 = vrot.slane %v882, 2
  %v897 = vrot.slane %v884, 2
  %v898 = vsel %vm89, %v896, %v897
  %v899 = vrot.slane %v885, 2
  %v900 = vsel %vm89, %v894, %v899
  %v901 = vrot.slane %v886, 2
  %v902 = vsel %vm89, %v897, %v901
  %903 = vrot.lane.b32.xlu0 %v895, 32
  %v904 = vpop.permute.xlu0 %903
  %905 = vrot.lane.b32.xlu0 %v898, 32
  %v906 = vpop.permute.xlu0 %905
  %907 = vrot.lane.b32.xlu0 %v900, 32
  %v908 = vpop.permute.xlu0 %907
  %909 = vrot.lane.b32.xlu0 %v902, 32
  %v910 = vpop.permute.xlu0 %909
  %v911 = vsel %vm147, %v904, %v906
  %v912 = vsel %vm147, %v908, %v910
  %917 = vst.msk [vmem:[#allocation3 + $0x10] sm:$0xff] %vm228, %v904
  %918 = vst.msk [vmem:[#allocation3 + $0x18] sm:$0xff] %vm230, %v911
  %919 = vst.msk [vmem:[#allocation3 + $0x30] sm:$0xff] %vm228, %v908
  %920 = vst.msk [vmem:[#allocation3 + $0x38] sm:$0xff] %vm230, %v912
  %v921 = vld [vmem:[#allocation2 + $0x20] sm:$0xf0]
  %v922 = vld [vmem:[#allocation2 + $0x28] sm:$0xf0]
  %v923 = vld [vmem:[#allocation2 + $0x30] sm:$0xff]
  %v924 = vld [vmem:[#allocation2 + $0x38] sm:$0xff]
  %v925 = vld [vmem:[#allocation2 + $0x40] sm:$0xf]
  %v926 = vld [vmem:[#allocation2 + $0x48] sm:$0xf]
  %v933 = vrot.slane %v921, 4
  %v934 = vrot.slane %v923, 4
  %v935 = vsel %vm246, %v933, %v934
  %v936 = vrot.slane %v922, 4
  %v937 = vrot.slane %v924, 4
  %v938 = vsel %vm246, %v936, %v937
  %v939 = vrot.slane %v925, 4
  %v940 = vsel %vm246, %v934, %v939
  %v941 = vrot.slane %v926, 4
  %v942 = vsel %vm246, %v937, %v941
  %943 = vrot.lane.b32.xlu0 %v935, 32
  %v944 = vpop.permute.xlu0 %943
  %945 = vrot.lane.b32.xlu0 %v938, 32
  %v946 = vpop.permute.xlu0 %945
  %947 = vrot.lane.b32.xlu0 %v940, 32
  %v948 = vpop.permute.xlu0 %947
  %949 = vrot.lane.b32.xlu0 %v942, 32
  %v950 = vpop.permute.xlu0 %949
  %v951 = vsel %vm147, %v944, %v946
  %v952 = vsel %vm147, %v948, %v950
  %957 = vst.msk [vmem:[#allocation3 + $0x50] sm:$0xff] %vm228, %v944
  %958 = vst.msk [vmem:[#allocation3 + $0x58] sm:$0xff] %vm230, %v951
  %959 = vst.msk [vmem:[#allocation3 + $0x70] sm:$0xff] %vm228, %v948
  %960 = vst.msk [vmem:[#allocation3 + $0x78] sm:$0xff] %vm230, %v952
  %v961 = vld [vmem:[#allocation3] sm:$0xff]
  %v962 = vld [vmem:[#allocation3 + $0x8] sm:$0xff]
  %v963 = vld [vmem:[#allocation3 + $0x10] sm:$0xff]
  %v964 = vld [vmem:[#allocation3 + $0x18] sm:$0xff]
  %v965 = vld [vmem:[#allocation3 + $0x20] sm:$0xff]
  %v966 = vld [vmem:[#allocation3 + $0x28] sm:$0xff]
  %v967 = vld [vmem:[#allocation3 + $0x30] sm:$0xff]
  %v968 = vld [vmem:[#allocation3 + $0x38] sm:$0xff]
  %v969 = vld [vmem:[#allocation3 + $0x40] sm:$0xff]
  %v970 = vld [vmem:[#allocation3 + $0x48] sm:$0xff]
  %v971 = vld [vmem:[#allocation3 + $0x50] sm:$0xff]
  %v972 = vld [vmem:[#allocation3 + $0x58] sm:$0xff]
  %v973 = vld [vmem:[#allocation3 + $0x60] sm:$0xff]
  %v974 = vld [vmem:[#allocation3 + $0x68] sm:$0xff]
  %v975 = vld [vmem:[#allocation3 + $0x70] sm:$0xff]
  %v976 = vld [vmem:[#allocation3 + $0x78] sm:$0xff]
  %v977 = vld [vmem:[%s2] sm:$0xff]
  %v978 = vld [vmem:[%s2 + $0x8] sm:$0xff]
  %v979 = vld [vmem:[%s2 + $0x10] sm:$0xff]
  %v980 = vld [vmem:[%s2 + $0x18] sm:$0xff]
  %v981 = vld [vmem:[%s2 + $0x20] sm:$0xff]
  %v982 = vld [vmem:[%s2 + $0x28] sm:$0xff]
  %v983 = vld [vmem:[%s2 + $0x30] sm:$0xff]
  %v984 = vld [vmem:[%s2 + $0x38] sm:$0xff]
  %v985 = vld [vmem:[%s2 + $0x40] sm:$0xff]
  %v986 = vld [vmem:[%s2 + $0x48] sm:$0xff]
  %v987 = vld [vmem:[%s2 + $0x50] sm:$0xff]
  %v988 = vld [vmem:[%s2 + $0x58] sm:$0xff]
  %v989 = vld [vmem:[%s2 + $0x60] sm:$0xff]
  %v990 = vld [vmem:[%s2 + $0x68] sm:$0xff]
  %v991 = vld [vmem:[%s2 + $0x70] sm:$0xff]
  %v992 = vld [vmem:[%s2 + $0x78] sm:$0xff]
  %v993 = vld [vmem:[%s2 + $0x80] sm:$0xff]
  %v994 = vld [vmem:[%s2 + $0x88] sm:$0xff]
  %v995 = vld [vmem:[%s2 + $0x90] sm:$0xff]
  %v996 = vld [vmem:[%s2 + $0x98] sm:$0xff]
  %v997 = vld [vmem:[%s2 + $0xa0] sm:$0xff]
  %v998 = vld [vmem:[%s2 + $0xa8] sm:$0xff]
  %v999 = vld [vmem:[%s2 + $0xb0] sm:$0xff]
  %v1000 = vld [vmem:[%s2 + $0xb8] sm:$0xff]
  %v1001 = vld [vmem:[%s2 + $0xc0] sm:$0xff]
  %v1002 = vld [vmem:[%s2 + $0xc8] sm:$0xff]
  %v1003 = vld [vmem:[%s2 + $0xd0] sm:$0xff]
  %v1004 = vld [vmem:[%s2 + $0xd8] sm:$0xff]
  %v1005 = vld [vmem:[%s2 + $0xe0] sm:$0xff]
  %v1006 = vld [vmem:[%s2 + $0xe8] sm:$0xff]
  %v1007 = vld [vmem:[%s2 + $0xf0] sm:$0xff]
  %v1008 = vld [vmem:[%s2 + $0xf8] sm:$0xff]
  %v1009 = vld [vmem:[%s2 + $0x100] sm:$0xff]
  %v1010 = vld [vmem:[%s2 + $0x108] sm:$0xff]
  %v1011 = vld [vmem:[%s2 + $0x110] sm:$0xff]
  %v1012 = vld [vmem:[%s2 + $0x118] sm:$0xff]
  %v1013 = vld [vmem:[%s2 + $0x120] sm:$0xff]
  %v1014 = vld [vmem:[%s2 + $0x128] sm:$0xff]
  %v1015 = vld [vmem:[%s2 + $0x130] sm:$0xff]
  %v1016 = vld [vmem:[%s2 + $0x138] sm:$0xff]
  %v1017 = vld [vmem:[%s2 + $0x140] sm:$0xff]
  %v1018 = vld [vmem:[%s2 + $0x148] sm:$0xff]
  %v1019 = vld [vmem:[%s2 + $0x150] sm:$0xff]
  %v1020 = vld [vmem:[%s2 + $0x158] sm:$0xff]
  %v1021 = vld [vmem:[%s2 + $0x160] sm:$0xff]
  %v1022 = vld [vmem:[%s2 + $0x168] sm:$0xff]
  %v1023 = vld [vmem:[%s2 + $0x170] sm:$0xff]
  %v1024 = vld [vmem:[%s2 + $0x178] sm:$0xff]
  %v1025 = vld [vmem:[%s2 + $0x180] sm:$0xff]
  %v1026 = vld [vmem:[%s2 + $0x188] sm:$0xff]
  %v1027 = vld [vmem:[%s2 + $0x190] sm:$0xff]
  %v1028 = vld [vmem:[%s2 + $0x198] sm:$0xff]
  %v1029 = vld [vmem:[%s2 + $0x1a0] sm:$0xff]
  %v1030 = vld [vmem:[%s2 + $0x1a8] sm:$0xff]
  %v1032 = vsel %vm230, %v964, 0
  %v1035 = vsel %vm230, %v968, 0
  %v1038 = vsel %vm230, %v972, 0
  %v1041 = vsel %vm230, %v976, 0
  %1043 = vmatprep.subr.mxu0 0.0
  %1044 = vmatpush1.msra.mxu0 %v977
  %1045 = vmatprep.subr.mxu0 0.0
  %1046 = vmatpush1.msra.mxu0 %v978
  %1047 = vmatprep.subr.mxu0 0.0
  %1048 = vmatpush1.msra.mxu0 %v979
  %1049 = vmatprep.subr.mxu0 0.0
  %1050 = vmatpush1.msra.mxu0 %v980
  %1051 = vmatprep.subr.mxu0 0.0
  %1052 = vmatpush1.msra.mxu0 %v981
  %1053 = vmatprep.subr.mxu0 0.0
  %1054 = vmatpush1.msra.mxu0 %v982
  %1055 = vmatprep.subr.mxu0 0.0
  %1056 = vmatpush1.msra.mxu0 %v983
  %1057 = vmatprep.subr.mxu0 0.0
  %1058 = vmatpush1.msra.mxu0 %v984
  %1059 = vmatprep.subr.mxu0 0.0
  %1060 = vmatpush1.msra.mxu0 %v985
  %1061 = vmatprep.subr.mxu0 0.0
  %1062 = vmatpush1.msra.mxu0 %v986
  %1063 = vmatprep.subr.mxu0 0.0
  %1064 = vmatpush1.msra.mxu0 %v987
  %1065 = vmatprep.subr.mxu0 0.0
  %1066 = vmatpush1.msra.mxu0 %v988
  %1067 = vmatprep.subr.mxu0 0.0
  %1068 = vmatpush1.msra.mxu0 %v989
  %1069 = vmatprep.subr.mxu0 0.0
  %1070 = vmatpush1.msra.mxu0 %v990
  %1071 = vmatprep.subr.mxu0 0.0
  %1072 = vmatpush1.msra.mxu0 %v991
  %1073 = vmatprep.subr.mxu0 0.0
  %1074 = vmatpush1.msra.mxu0 %v992
  %1075 = vmatprep.subr.mxu0 0.0
  %1076 = vmatpush1.msra.mxu0 %v993
  %1077 = vmatprep.subr.mxu0 0.0
  %1078 = vmatpush1.msra.mxu0 %v994
  %1079 = vmatprep.subr.mxu0 0.0
  %1080 = vmatpush1.msra.mxu0 %v995
  %1081 = vmatprep.subr.mxu0 0.0
  %1082 = vmatpush1.msra.mxu0 %v996
  %1083 = vmatprep.subr.mxu0 0.0
  %1084 = vmatpush1.msra.mxu0 %v997
  %1085 = vmatprep.subr.mxu0 0.0
  %1086 = vmatpush1.msra.mxu0 %v998
  %1087 = vmatprep.subr.mxu0 0.0
  %1088 = vmatpush1.msra.mxu0 %v999
  %1089 = vmatprep.subr.mxu0 0.0
  %1090 = vmatpush1.msra.mxu0 %v1000
  %1091 = vmatprep.subr.mxu0 0.0
  %1092 = vmatpush1.msra.mxu0 %v1001
  %1093 = vmatprep.subr.mxu0 0.0
  %1094 = vmatpush1.msra.mxu0 %v1002
  %1095 = vmatprep.subr.mxu0 0.0
  %1096 = vmatpush1.msra.mxu0 %v1003
  %1097 = vmatprep.subr.mxu0 0.0
  %1098 = vmatpush1.msra.mxu0 %v1004
  %1099 = vmatprep.subr.mxu0 0.0
  %1100 = vmatpush1.msra.mxu0 %v1005
  %1101 = vmatprep.subr.mxu0 0.0
  %1102 = vmatpush1.msra.mxu0 %v1006
  %1103 = vmatprep.subr.mxu0 0.0
  %1104 = vmatpush1.msra.mxu0 %v1007
  %1105 = vmatprep.subr.mxu0 0.0
  %1106 = vmatpush1.msra.mxu0 %v1008
  %1107 = vmatprep.mubr.f32.mxu0 %v962
  %1108 = vmatmul.mubr.f32.gmra.mrb[0].mxu0 %v961
  %v1109 = vpop.f32.mrb[0].mxu0
  %v1110 = vadd.f32 0.0, %v1109
  %v1111 = vpop.f32.mrb[0].mxu0
  %1112 = vmatprep.mubr.f32.mxu0 %v966
  %1113 = vmatmul.mubr.f32.gmra.mrb[0].mxu0 %v965
  %v1114 = vpop.f32.mrb[0].mxu0
  %v1115 = vadd.f32 0.0, %v1114
  %v1116 = vpop.f32.mrb[0].mxu0
  %1117 = vmatprep.mubr.f32.mxu0 %v970
  %1118 = vmatmul.mubr.f32.gmra.mrb[0].mxu0 %v969
  %v1119 = vpop.f32.mrb[0].mxu0
  %v1120 = vadd.f32 0.0, %v1119
  %v1121 = vpop.f32.mrb[0].mxu0
  %1122 = vmatprep.mubr.f32.mxu0 %v974
  %1123 = vmatmul.mubr.f32.gmra.mrb[0].mxu0 %v973
  %v1124 = vpop.f32.mrb[0].mxu0
  %v1125 = vadd.f32 0.0, %v1124
  %v1126 = vpop.f32.mrb[0].mxu0
  %1127 = vdwg.mxu0
  %1128 = vmatprep.subr.mxu0 0.0
  %1129 = vmatpush1.msra.mxu0 %v1009
  %1130 = vmatprep.subr.mxu0 0.0
  %1131 = vmatpush1.msra.mxu0 %v1010
  %1132 = vmatprep.subr.mxu0 0.0
  %1133 = vmatpush1.msra.mxu0 %v1011
  %1134 = vmatprep.subr.mxu0 0.0
  %1135 = vmatpush1.msra.mxu0 %v1012
  %1136 = vmatprep.subr.mxu0 0.0
  %1137 = vmatpush1.msra.mxu0 %v1013
  %1138 = vmatprep.subr.mxu0 0.0
  %1139 = vmatpush1.msra.mxu0 %v1014
  %1140 = vmatprep.subr.mxu0 0.0
  %1141 = vmatpush1.msra.mxu0 %v1015
  %1142 = vmatprep.subr.mxu0 0.0
  %1143 = vmatpush1.msra.mxu0 %v1016
  %1144 = vmatprep.subr.mxu0 0.0
  %1145 = vmatpush1.msra.mxu0 %v1017
  %1146 = vmatprep.subr.mxu0 0.0
  %1147 = vmatpush1.msra.mxu0 %v1018
  %1148 = vmatprep.subr.mxu0 0.0
  %1149 = vmatpush1.msra.mxu0 %v1019
  %1150 = vmatprep.subr.mxu0 0.0
  %1151 = vmatpush1.msra.mxu0 %v1020
  %1152 = vmatprep.subr.mxu0 0.0
  %1153 = vmatpush1.msra.mxu0 %v1021
  %1154 = vmatprep.subr.mxu0 0.0
  %1155 = vmatpush1.msra.mxu0 %v1022
  %1156 = vmatprep.subr.mxu0 0.0
  %1157 = vmatpush1.msra.mxu0 %v1023
  %1158 = vmatprep.subr.mxu0 0.0
  %1159 = vmatpush1.msra.mxu0 %v1024
  %1160 = vmatprep.subr.mxu0 0.0
  %1161 = vmatpush1.msra.mxu0 %v1025
  %1162 = vmatprep.subr.mxu0 0.0
  %1163 = vmatpush1.msra.mxu0 %v1026
  %1164 = vmatprep.subr.mxu0 0.0
  %1165 = vmatpush1.msra.mxu0 %v1027
  %1166 = vmatprep.subr.mxu0 0.0
  %1167 = vmatpush1.msra.mxu0 %v1028
  %1168 = vmatprep.subr.mxu0 0.0
  %1169 = vmatpush1.msra.mxu0 %v1029
  %1170 = vmatprep.subr.mxu0 0.0
  %1171 = vmatpush1.msra.mxu0 %v1030
  %1172 = vmatprep.subr.mxu0 0.0
  %1173 = vmatpush1.msra.mxu0 0.0
  %1174 = vmatprep.subr.mxu0 0.0
  %1175 = vmatpush1.msra.mxu0 0.0
  %1176 = vmatprep.subr.mxu0 0.0
  %1177 = vmatpush1.msra.mxu0 0.0
  %1178 = vmatprep.subr.mxu0 0.0
  %1179 = vmatpush1.msra.mxu0 0.0
  %1180 = vmatprep.subr.mxu0 0.0
  %1181 = vmatpush1.msra.mxu0 0.0
  %1182 = vmatprep.subr.mxu0 0.0
  %1183 = vmatpush1.msra.mxu0 0.0
  %1184 = vmatprep.subr.mxu0 0.0
  %1185 = vmatpush1.msra.mxu0 0.0
  %1186 = vmatprep.subr.mxu0 0.0
  %1187 = vmatpush1.msra.mxu0 0.0
  %1188 = vmatprep.subr.mxu0 0.0
  %1189 = vmatpush1.msra.mxu0 0.0
  %1190 = vmatprep.subr.mxu0 0.0
  %1191 = vmatpush1.msra.mxu0 0.0
  %1192 = vmatprep.mubr.f32.mxu0 %v1032
  %1193 = vmatmul.mubr.f32.gmra.mrb[0].mxu0 %v963
  %v1194 = vpop.f32.mrb[0].mxu0
  %v1195 = vadd.f32 %v1110, %v1194
  %v1196 = vpop.f32.mrb[0].mxu0
  %1197 = vmatprep.mubr.f32.mxu0 %v1035
  %1198 = vmatmul.mubr.f32.gmra.mrb[0].mxu0 %v967
  %v1199 = vpop.f32.mrb[0].mxu0
  %v1200 = vadd.f32 %v1115, %v1199
  %v1201 = vpop.f32.mrb[0].mxu0
  %1202 = vmatprep.mubr.f32.mxu0 %v1038
  %1203 = vmatmul.mubr.f32.gmra.mrb[0].mxu0 %v971
  %v1204 = vpop.f32.mrb[0].mxu0
  %v1205 = vadd.f32 %v1120, %v1204
  %v1206 = vpop.f32.mrb[0].mxu0
  %1207 = vmatprep.mubr.f32.mxu0 %v1041
  %1208 = vmatmul.mubr.f32.gmra.mrb[0].mxu0 %v975
  %v1209 = vpop.f32.mrb[0].mxu0
  %v1210 = vadd.f32 %v1125, %v1209
  %v1211 = vpop.f32.mrb[0].mxu0
  %1212 = vdwg.mxu0
  %v1213 = vld [vmem:[%s5] sm:$0x1]
  %v1214 = vld [vmem:[%s6] sm:$0x1]
  %v1215 = vadd.f32 %v1195, %v1200
  %v1216 = vadd.f32 %v1215, %v1205
  %v1217 = vadd.f32 %v1216, %v1210
  %v1218 = vrot.slane %v1217, 4
  %v1219 = vadd.f32 %v1217, %v1218
  %v1220 = vrot.slane %v1219, 2
  %v1221 = vadd.f32 %v1219, %v1220
  %v1222 = vrot.slane %v1221, 1
  %v1223 = vadd.f32 %v1221, %v1222
  %v1224 = vld [vmem:[%s7] sm:$0xff]
  %v1225 = vld [vmem:[%s7 + $0x8] sm:$0xff]
  %v1226 = vld [vmem:[%s7 + $0x10] sm:$0xff]
  %v1227 = vld [vmem:[%s7 + $0x18] sm:$0xff]
  %v1228 = vld [vmem:[%s7 + $0x20] sm:$0xff]
  %v1229 = vld [vmem:[%s7 + $0x28] sm:$0xff]
  %v1230 = vld [vmem:[%s7 + $0x30] sm:$0xff]
  %v1231 = vld [vmem:[%s7 + $0x38] sm:$0xff]
  %v1232 = vld [vmem:[%s7 + $0x40] sm:$0xff]
  %v1233 = vld [vmem:[%s7 + $0x48] sm:$0xff]
  %v1234 = vld [vmem:[%s7 + $0x50] sm:$0xff]
  %v1235 = vld [vmem:[%s7 + $0x58] sm:$0xff]
  %v1236 = vld [vmem:[%s7 + $0x60] sm:$0xff]
  %v1237 = vld [vmem:[%s7 + $0x68] sm:$0xff]
  %v1238 = vld [vmem:[%s7 + $0x70] sm:$0xff]
  %v1239 = vld [vmem:[%s7 + $0x78] sm:$0xff]
  %1240 = vmatprep.subr.mxu0 0.0
  %1241 = vmatpush1.msra.mxu0 %v1224
  %1242 = vmatprep.subr.mxu0 0.0
  %1243 = vmatpush1.msra.mxu0 %v1225
  %1244 = vmatprep.subr.mxu0 0.0
  %1245 = vmatpush1.msra.mxu0 %v1226
  %1246 = vmatprep.subr.mxu0 0.0
  %1247 = vmatpush1.msra.mxu0 %v1227
  %1248 = vmatprep.subr.mxu0 0.0
  %1249 = vmatpush1.msra.mxu0 %v1228
  %1250 = vmatprep.subr.mxu0 0.0
  %1251 = vmatpush1.msra.mxu0 %v1229
  %1252 = vmatprep.subr.mxu0 0.0
  %1253 = vmatpush1.msra.mxu0 %v1230
  %1254 = vmatprep.subr.mxu0 0.0
  %1255 = vmatpush1.msra.mxu0 %v1231
  %1256 = vmatprep.subr.mxu0 0.0
  %1257 = vmatpush1.msra.mxu0 %v1232
  %1258 = vmatprep.subr.mxu0 0.0
  %1259 = vmatpush1.msra.mxu0 %v1233
  %1260 = vmatprep.subr.mxu0 0.0
  %1261 = vmatpush1.msra.mxu0 %v1234
  %1262 = vmatprep.subr.mxu0 0.0
  %1263 = vmatpush1.msra.mxu0 %v1235
  %1264 = vmatprep.subr.mxu0 0.0
  %1265 = vmatpush1.msra.mxu0 %v1236
  %1266 = vmatprep.subr.mxu0 0.0
  %1267 = vmatpush1.msra.mxu0 %v1237
  %1268 = vmatprep.subr.mxu0 0.0
  %1269 = vmatpush1.msra.mxu0 %v1238
  %1270 = vmatprep.subr.mxu0 0.0
  %1271 = vmatpush1.msra.mxu0 %v1239
  %1272 = vmatprep.subr.mxu0 0.0
  %1273 = vmatpush1.msra.mxu0 0.0
  %1274 = vmatprep.subr.mxu0 0.0
  %1275 = vmatpush1.msra.mxu0 0.0
  %1276 = vmatprep.subr.mxu0 0.0
  %1277 = vmatpush1.msra.mxu0 0.0
  %1278 = vmatprep.subr.mxu0 0.0
  %1279 = vmatpush1.msra.mxu0 0.0
  %1280 = vmatprep.subr.mxu0 0.0
  %1281 = vmatpush1.msra.mxu0 0.0
  %1282 = vmatprep.subr.mxu0 0.0
  %1283 = vmatpush1.msra.mxu0 0.0
  %1284 = vmatprep.subr.mxu0 0.0
  %1285 = vmatpush1.msra.mxu0 0.0
  %1286 = vmatprep.subr.mxu0 0.0
  %1287 = vmatpush1.msra.mxu0 0.0
  %1288 = vmatprep.subr.mxu0 0.0
  %1289 = vmatpush1.msra.mxu0 0.0
  %1290 = vmatprep.subr.mxu0 0.0
  %1291 = vmatpush1.msra.mxu0 0.0
  %1292 = vmatprep.subr.mxu0 0.0
  %1293 = vmatpush1.msra.mxu0 0.0
  %1294 = vmatprep.subr.mxu0 0.0
  %1295 = vmatpush1.msra.mxu0 0.0
  %1296 = vmatprep.subr.mxu0 0.0
  %1297 = vmatpush1.msra.mxu0 0.0
  %1298 = vmatprep.subr.mxu0 0.0
  %1299 = vmatpush1.msra.mxu0 0.0
  %1300 = vmatprep.subr.mxu0 0.0
  %1301 = vmatpush1.msra.mxu0 0.0
  %1302 = vmatprep.subr.mxu0 0.0
  %1303 = vmatpush1.msra.mxu0 0.0
  %1304 = vmatprep.mubr.f32.mxu0 0.0
  %1305 = vmatmul.mubr.f32.gmra.mrb[0].mxu0 %v1223
  %v1306 = vpop.f32.mrb[0].mxu0
  %v1307 = vadd.f32 0.0, %v1306
  %v1308 = vpop.f32.mrb[0].mxu0
  %1309 = vdwg.mxu0
  %v1310 = vmul.f32 %v1195, %v1195
  %v1311 = vmul.f32 %v1200, %v1200
  %v1312 = vmul.f32 %v1205, %v1205
  %v1313 = vmul.f32 %v1210, %v1210
  %v1314 = vadd.f32 %v1310, %v1311
  %v1315 = vadd.f32 %v1314, %v1312
  %v1316 = vadd.f32 %v1315, %v1313
  %v1317 = vrot.slane %v1316, 4
  %v1318 = vadd.f32 %v1316, %v1317
  %v1319 = vrot.slane %v1318, 2
  %v1320 = vadd.f32 %v1318, %v1319
  %v1321 = vrot.slane %v1320, 1
  %v1322 = vadd.f32 %v1320, %v1321
  %1323 = vmatprep.subr.mxu0 0.0
  %1324 = vmatpush1.msra.mxu0 %v1224
  %1325 = vmatprep.subr.mxu0 0.0
  %1326 = vmatpush1.msra.mxu0 %v1225
  %1327 = vmatprep.subr.mxu0 0.0
  %1328 = vmatpush1.msra.mxu0 %v1226
  %1329 = vmatprep.subr.mxu0 0.0
  %1330 = vmatpush1.msra.mxu0 %v1227
  %1331 = vmatprep.subr.mxu0 0.0
  %1332 = vmatpush1.msra.mxu0 %v1228
  %1333 = vmatprep.subr.mxu0 0.0
  %1334 = vmatpush1.msra.mxu0 %v1229
  %1335 = vmatprep.subr.mxu0 0.0
  %1336 = vmatpush1.msra.mxu0 %v1230
  %1337 = vmatprep.subr.mxu0 0.0
  %1338 = vmatpush1.msra.mxu0 %v1231
  %1339 = vmatprep.subr.mxu0 0.0
  %1340 = vmatpush1.msra.mxu0 %v1232
  %1341 = vmatprep.subr.mxu0 0.0
  %1342 = vmatpush1.msra.mxu0 %v1233
  %1343 = vmatprep.subr.mxu0 0.0
  %1344 = vmatpush1.msra.mxu0 %v1234
  %1345 = vmatprep.subr.mxu0 0.0
  %1346 = vmatpush1.msra.mxu0 %v1235
  %1347 = vmatprep.subr.mxu0 0.0
  %1348 = vmatpush1.msra.mxu0 %v1236
  %1349 = vmatprep.subr.mxu0 0.0
  %1350 = vmatpush1.msra.mxu0 %v1237
  %1351 = vmatprep.subr.mxu0 0.0
  %1352 = vmatpush1.msra.mxu0 %v1238
  %1353 = vmatprep.subr.mxu0 0.0
  %1354 = vmatpush1.msra.mxu0 %v1239
  %1355 = vmatprep.subr.mxu0 0.0
  %1356 = vmatpush1.msra.mxu0 0.0
  %1357 = vmatprep.subr.mxu0 0.0
  %1358 = vmatpush1.msra.mxu0 0.0
  %1359 = vmatprep.subr.mxu0 0.0
  %1360 = vmatpush1.msra.mxu0 0.0
  %1361 = vmatprep.subr.mxu0 0.0
  %1362 = vmatpush1.msra.mxu0 0.0
  %1363 = vmatprep.subr.mxu0 0.0
  %1364 = vmatpush1.msra.mxu0 0.0
  %1365 = vmatprep.subr.mxu0 0.0
  %1366 = vmatpush1.msra.mxu0 0.0
  %1367 = vmatprep.subr.mxu0 0.0
  %1368 = vmatpush1.msra.mxu0 0.0
  %1369 = vmatprep.subr.mxu0 0.0
  %1370 = vmatpush1.msra.mxu0 0.0
  %1371 = vmatprep.subr.mxu0 0.0
  %1372 = vmatpush1.msra.mxu0 0.0
  %1373 = vmatprep.subr.mxu0 0.0
  %1374 = vmatpush1.msra.mxu0 0.0
  %1375 = vmatprep.subr.mxu0 0.0
  %1376 = vmatpush1.msra.mxu0 0.0
  %1377 = vmatprep.subr.mxu0 0.0
  %1378 = vmatpush1.msra.mxu0 0.0
  %1379 = vmatprep.subr.mxu0 0.0
  %1380 = vmatpush1.msra.mxu0 0.0
  %1381 = vmatprep.subr.mxu0 0.0
  %1382 = vmatpush1.msra.mxu0 0.0
  %1383 = vmatprep.subr.mxu0 0.0
  %1384 = vmatpush1.msra.mxu0 0.0
  %1385 = vmatprep.subr.mxu0 0.0
  %1386 = vmatpush1.msra.mxu0 0.0
  %1387 = vmatprep.mubr.f32.mxu0 0.0
  %1388 = vmatmul.mubr.f32.gmra.mrb[0].mxu0 %v1322
  %v1389 = vpop.f32.mrb[0].mxu0
  %v1390 = vadd.f32 0.0, %v1389
  %v1391 = vpop.f32.mrb[0].mxu0
  %1392 = vdwg.mxu0
  %v1393 = vmul.f32 %v1307, 0.001953125
  %v1394 = vmul.f32 %v1390, 0.001953125
  %v1395 = vmul.f32 %v1393, %v1393
  %v1396 = vsub.f32 %v1394, %v1395
  %v1397 = vmax.f32 %v1396, 0.0
  %v1398 = vadd.f32 %v1397, 1e-05
  %v1399 = vrsqrt.pop %v1398
  %v1400 = vmul.f32 %v1213, %v1399
  %v1401 = vmul.f32 %v1393, %v1400
  %v1402 = vsub.f32 %v1214, %v1401
  %v1404 = vlaneseq
  %v1405 = vshrl.u32 %v1404, 7
  %v1406 = vsub.s32 0, %v1405
  %v1407 = vrot.slane %v1400, %v1406
  %v1409 = vmul.f32 %v1195, %v1407
  %v1410 = vmul.f32 %v1200, %v1407
  %v1411 = vmul.f32 %v1205, %v1407
  %v1412 = vmul.f32 %v1210, %v1407
  %v1414 = vlaneseq
  %v1415 = vshrl.u32 %v1414, 7
  %v1416 = vsub.s32 0, %v1415
  %v1417 = vrot.slane %v1402, %v1416
  %v1419 = vadd.f32 %v1409, %v1417
  %v1420 = vadd.f32 %v1410, %v1417
  %v1421 = vadd.f32 %v1411, %v1417
  %v1422 = vadd.f32 %v1412, %v1417
  %v1423 = vadd.f32 %v1419, %v41
  %v1424 = vadd.f32 %v1420, %v42
  %v1425 = vadd.f32 %v1421, %v43
  %v1426 = vadd.f32 %v1422, %v44
  %v1427 = vmax.f32 %v1423, 0.0
  %v1428 = vmax.f32 %v1424, 0.0
  %v1429 = vmax.f32 %v1425, 0.0
  %v1430 = vmax.f32 %v1426, 0.0
  %1431 = vst [vmem:[%s8] sm:$0xff] %v1427
  %1432 = vst [vmem:[%s8 + $0x8] sm:$0xff] %v1428
  %1433 = vst [vmem:[%s8 + $0x10] sm:$0xff] %v1429
  %1434 = vst [vmem:[%s8 + $0x18] sm:$0xff] %v1430
  // Predicated region
  $region34: #{rs_block_forward.1} parent=0 // pred_check
    _
  $region35: #{rs_block_forward.1} parent=0 // pred_check_branch
    %1436 = sbr.rel (0) target = $region37
  $region36: #{rs_block_forward.1} parent=0 // pred_region
    _
  $region37: #{rs_block_forward.1} parent=0 // pred_fallthru
    _
  // Predicated region
  $region38: #{rs_block_forward.1} parent=0 // pred_check
    _
  $region39: #{rs_block_forward.1} parent=0 // pred_check_branch
    %1438 = sbr.rel (0) target = $region41
  $region40: #{rs_block_forward.1} parent=0 // pred_region
    _
  $region41: #{rs_block_forward.1} parent=0 // pred_fallthru
    _

</llo_original>
